<compile_context>
chip_gen: v6e
topology: v6e:2x2x1
jax: 0.10.0
libtpu: 0.0.40
codegen_flags: <defaults>
</compile_context>

<pallas_src>
import functools

import numpy as np
import jax
import jax.numpy as jnp
from jax import lax
from jax.experimental import pallas as pl
from jax.experimental.pallas import tpu as pltpu

BINS = (1, 2, 3, 6)
LANE = 128


def _pad_to(x, m):
    return (x + m - 1) // m * m


# ---------------------------------------------------------------------------
# Spatial linear operators (numpy, built at trace time from static shapes)
# ---------------------------------------------------------------------------
def adaptive_pool_matrix(in_size, out_size):
    """Row-stochastic matrix reproducing nn.AdaptiveAvgPool2d along one axis."""
    m = np.zeros((out_size, in_size), np.float32)
    for i in range(out_size):
        start = (i * in_size) // out_size
        end = -(-((i + 1) * in_size) // out_size)  # ceil
        m[i, start:end] = 1.0 / (end - start)
    return m


def bilinear_matrix(in_size, out_size):
    """F.interpolate(mode='bilinear', align_corners=True) weights along one axis."""
    m = np.zeros((out_size, in_size), np.float32)
    if in_size == 1:
        m[:, 0] = 1.0
        return m
    if out_size == 1:
        m[0, 0] = 1.0
        return m
    scale = (in_size - 1) / (out_size - 1)
    for i in range(out_size):
        src = i * scale
        i0 = min(int(np.floor(src)), in_size - 1)
        i1 = min(i0 + 1, in_size - 1)
        frac = src - i0
        m[i, i0] += 1.0 - frac
        m[i, i1] += frac
    return m


# ---------------------------------------------------------------------------
# The single fused Pallas kernel: one grid step == one batch element.
# ---------------------------------------------------------------------------
def _pspnet_kernel(xs_ref, wf_ref, bf_ref, pool_ref, wpyr_ref, bpyr_ref,
                   mask_ref, wbstk_ref, uall_ref, wb0_ref, bb_ref,
                   wclsT_ref, bclsT_ref, mh_ref, uwT_ref, out_ref,
                   *, h, w, H, W, co8):
    f32 = jnp.float32
    bf16 = jnp.bfloat16

    xs = xs_ref[0]                                              # (hw, cin) bf16

    # --- synthetic feature extractor: 1x1 conv (stride-2 done outside) + ReLU
    feat = jnp.dot(xs, wf_ref[...], preferred_element_type=f32)
    feat = jnp.maximum(feat + bf_ref[...], 0.0)                 # (hw, cf_p) f32
    feat16 = feat.astype(bf16)

    # --- adaptive average pools for ALL bins in one spatial GEMM (bf16 ops)
    pooled = jnp.dot(pool_ref[...], feat16, preferred_element_type=f32)  # (Pp, cf_p)

    # --- the four pyramid ConvBnReLU 1x1 convs batched into one wide GEMM.
    # (At real pyramid widths, switch to 4 per-bin dots to avoid the 4x
    #  redundant MACs; at cf_p=128 the single wide GEMM is cheaper overall.)
    conv = jnp.dot(pooled.astype(bf16), wpyr_ref[...], preferred_element_type=f32)
    conv = jnp.where(mask_ref[...] > 0,
                     jnp.maximum(conv + bpyr_ref[...], 0.0), 0.0)        # (Pp, 4*cf_p)

    # --- fold each branch through its bottleneck weight slice at bxb resolution
    contrib = jnp.dot(conv.astype(bf16), wbstk_ref[...],
                      preferred_element_type=f32)                        # (Pp, cp_p)

    # --- bilinear (align_corners) upsample of all branches + sum, one GEMM
    pyr = jnp.dot(uall_ref[...], contrib.astype(bf16),
                  preferred_element_type=f32)                            # (hw, cp_p)

    # --- identity slice of the concat + bottleneck bias, then bottleneck ReLU
    z = jnp.dot(feat16, wb0_ref[...], preferred_element_type=f32)
    z = jnp.maximum(z + pyr + bb_ref[...], 0.0)                          # (hw, cp_p)

    # --- classifier 1x1 conv with classes moved onto the SUBLANE axis.
    #     Batched (over h) dot_general contracting the channel (lane) axis:
    #     (h, co8, cp_p) x (h, w, cp_p) -> (h, co8, w).
    # TODO(synk): train-mode Dropout2d (stochastic channel masking) not modeled.
    z3 = z.reshape(h, w, -1).astype(bf16)                                # (h, w, cp_p)
    wcT = jnp.broadcast_to(wclsT_ref[...], (h,) + wclsT_ref.shape)       # (h, co8, cp_p)
    cls3 = lax.dot_general(wcT, z3, (((2,), (2,)), ((0,), (0,))),
                           preferred_element_type=f32)                   # (h, co8, w)
    cls3 = cls3 + bclsT_ref[...][None]

    # --- separable align_corners bilinear upsample to the input resolution:
    #     h axis first via a channel-block-structured (co8*H, co8*h) matrix,
    #     then the w axis via (w, W).  Rows come out ordered (class, Y).
    r1 = jnp.dot(mh_ref[...], cls3.reshape(h * co8, w).astype(bf16),
                 preferred_element_type=f32)                             # (co8*H, w)
    r2 = jnp.dot(r1.astype(bf16), uwT_ref[...],
                 preferred_element_type=f32)                             # (co8*H, W)

    out_ref[0] = r2.reshape(co8, H, W).astype(out_ref.dtype)             # NCHW block


# ---------------------------------------------------------------------------
# Parameters: deterministic synthetic init, BN folded, padded/stacked ONCE.
# ---------------------------------------------------------------------------
def init_model(key, in_channels, feature_channels, ppm_channels, out_channels):
    cin, cf, cp, co = in_channels, feature_channels, ppm_channels, out_channels
    cf_p, cp_p = _pad_to(cf, LANE), _pad_to(cp, LANE)
    co8 = _pad_to(co, 8)
    nb = len(BINS)
    keys = iter(jax.random.split(key, 64))

    def nrm(shape, s=0.1):
        return s * jax.random.normal(next(keys), shape, jnp.float32)

    def fold_bn(wm, c_out):
        gamma = 1.0 + nrm((c_out,))
        beta = nrm((c_out,))
        mean = nrm((c_out,))
        var = 1.0 + jnp.abs(nrm((c_out,)))
        scale = gamma / jnp.sqrt(var + 1e-5)
        return wm * scale[None, :], beta - mean * scale

    # synthetic feature extractor: 1x1 conv (stride 2) + ReLU
    w_feat, b_feat = nrm((cin, cf)), nrm((cf,))
    # pyramid branches: ConvBnReLU2d(cf, cf, 1) each (BN folded)
    w_pyr, b_pyr = [], []
    for _ in BINS:
        wj, bj = fold_bn(nrm((cf, cf)), cf)
        w_pyr.append(wj)
        b_pyr.append(bj)
    # bottleneck: ConvBnReLU2d((nb+1)*cf, cp, 1) (BN folded)
    w_bn, b_bn = fold_bn(nrm((cf * (nb + 1), cp)), cp)
    # classifier: Dropout2d(0.1) [identity in eval] + Conv2d(cp, co, 1)
    w_cls, b_cls = nrm((cp, co)), nrm((co,))

    # ---- pad channel dims to lane multiples; GEMM operands in bf16 ----------
    def padw(wm, r, c, rp, cpd):
        return jnp.zeros((rp, cpd), jnp.float32).at[:r, :c].set(wm)

    def padb(bv, c, cpd):
        return jnp.zeros((1, cpd), jnp.float32).at[0, :c].set(bv)

    # feature conv weight keeps the raw cin rows (MXU pads K internally).
    wf = jnp.zeros((cin, cf_p), jnp.float32).at[:, :cf].set(w_feat).astype(jnp.bfloat16)
    bf = padb(b_feat, cf, cf_p)

    wpyr = jnp.zeros((cf_p, nb * cf_p), jnp.float32)
    bpyr = jnp.zeros((1, nb * cf_p), jnp.float32)
    for j in range(nb):
        wpyr = wpyr.at[:cf, j * cf_p:j * cf_p + cf].set(w_pyr[j])
        bpyr = bpyr.at[0, j * cf_p:j * cf_p + cf].set(b_pyr[j])
    wpyr = wpyr.astype(jnp.bfloat16)

    # bottleneck weight: identity slice (rows [0:cf]) + per-branch slices stacked
    wb0 = padw(w_bn[:cf], cf, cp, cf_p, cp_p).astype(jnp.bfloat16)
    wbstk = jnp.zeros((nb * cf_p, cp_p), jnp.float32)
    for j in range(nb):
        wbstk = wbstk.at[j * cf_p:j * cf_p + cf, :cp].set(
            w_bn[(j + 1) * cf:(j + 2) * cf])
    wbstk = wbstk.astype(jnp.bfloat16)
    bb = padb(b_bn, cp, cp_p)

    # classifier, transposed: classes on the sublane axis (padded to 8)
    wclsT = jnp.zeros((co8, cp_p), jnp.float32).at[:co, :cp].set(w_cls.T)
    wclsT = wclsT.astype(jnp.bfloat16)
    bclsT = jnp.zeros((co8, 1), jnp.float32).at[:co, 0].set(b_cls)

    model = dict(wf=wf, bf=bf, wpyr=wpyr, bpyr=bpyr, wbstk=wbstk,
                 wb0=wb0, bb=bb, wclsT=wclsT, bclsT=bclsT)
    dims = dict(cin=cin, cf=cf, cp=cp, co=co, co8=co8, cf_p=cf_p, cp_p=cp_p)
    return model, dims


# ---------------------------------------------------------------------------
# Forward pass: one pallas_call for the whole network.
# ---------------------------------------------------------------------------
def pspnet_forward(x_nchw, model, dims):
    n, cin, H, W = x_nchw.shape
    cf_p, cp_p = dims['cf_p'], dims['cp_p']
    co, co8 = dims['co'], dims['co8']
    nb = len(BINS)

    # NCHW -> NHWC; synthetic backbone's stride-2 spatial subsample.
    x = jnp.transpose(x_nchw, (0, 2, 3, 1))
    xs = x[:, ::2, ::2, :]
    h, w = int(xs.shape[1]), int(xs.shape[2])
    hw = h * w

    # Activation passed un-padded: (n, hw, cin) bf16 (the MXU pads K for free).
    xs_p = xs.reshape(n, hw, cin).astype(jnp.bfloat16)

    # Trace-time spatial operator constants, all bf16 (channels stay on lanes
    # for the pyramid; the final upsample operates class-major).
    pools, ups = [], []
    for b in BINS:
        pools.append(np.kron(adaptive_pool_matrix(h, b), adaptive_pool_matrix(w, b)))
        ups.append(np.kron(bilinear_matrix(b, h), bilinear_matrix(b, w)))
    pool_all = np.concatenate(pools, axis=0)          # (P, hw)   P = sum b*b = 50
    up_all = np.concatenate(ups, axis=1)              # (hw, P)
    P = pool_all.shape[0]
    Pp = _pad_to(P, 8)
    pool_pad = np.zeros((Pp, hw), np.float32)
    pool_pad[:P] = pool_all
    up_pad = np.zeros((hw, Pp), np.float32)
    up_pad[:, :P] = up_all

    # Separable final upsample: h-axis map, block-replicated over the co8
    # sublane classes (rows ordered (class, Y), cols ordered (y, class)),
    # followed by the plain w-axis map.  A few KiB instead of O(H^2*W^2).
    Uh = bilinear_matrix(h, H)                         # (H, h)
    Mh = np.zeros((co8 * H, h * co8), np.float32)
    for c in range(co8):
        Mh[c * H:(c + 1) * H, c::co8] = Uh
    UwT = np.ascontiguousarray(bilinear_matrix(w, W).T)  # (w, W)

    # Branch-selection mask: rows of bin j only keep weight/bias block j.
    mask = np.zeros((Pp, nb * cf_p), np.float32)
    off = 0
    for j, b in enumerate(BINS):
        mask[off:off + b * b, j * cf_p:(j + 1) * cf_p] = 1.0
        off += b * b

    bf16 = jnp.bfloat16
    pool_c = jnp.asarray(pool_pad, bf16)
    up_c = jnp.asarray(up_pad, bf16)
    mask_c = jnp.asarray(mask, bf16)
    mh_c = jnp.asarray(Mh, bf16)
    uwT_c = jnp.asarray(UwT, bf16)

    # Rough VMEM budget (constants + I/O blocks + activations, double-buffered
    # pessimistically, 2x headroom), clamped below v7x's 64 MiB physical VMEM.
    const_bytes = sum(int(np.prod(a.shape)) * a.dtype.itemsize for a in
                      (pool_c, up_c, mask_c, mh_c, uwT_c,
                       model['wf'], model['bf'], model['wpyr'], model['bpyr'],
                       model['wbstk'], model['wb0'], model['bb'],
                       model['wclsT'], model['bclsT']))
    io_bytes = hw * cin * 2 + co8 * H * W * 4
    act_bytes = 4 * hw * max(cf_p, cp_p) * 4
    vmem_limit = int(min(max(4 * (const_bytes + io_bytes + act_bytes),
                             32 * 1024 * 1024), 48 * 1024 * 1024))

    c2 = lambda i: (0, 0)
    kernel = functools.partial(_pspnet_kernel, h=h, w=w, H=H, W=W, co8=co8)

    out_pad = pl.pallas_call(
        kernel,
        out_shape=jax.ShapeDtypeStruct((n, co8, H, W), jnp.float32),
        grid=(n,),
        in_specs=[
            pl.BlockSpec((1, hw, cin), lambda i: (i, 0, 0)),   # xs (per-batch)
            pl.BlockSpec((cin, cf_p), c2),                     # feature conv weight
            pl.BlockSpec((1, cf_p), c2),                       # feature conv bias
            pl.BlockSpec((Pp, hw), c2),                        # stacked adaptive pools
            pl.BlockSpec((cf_p, nb * cf_p), c2),               # 4 pyramid convs (wide)
            pl.BlockSpec((1, nb * cf_p), c2),                  # their biases
            pl.BlockSpec((Pp, nb * cf_p), c2),                 # branch-selection mask
            pl.BlockSpec((nb * cf_p, cp_p), c2),               # bottleneck branch slices
            pl.BlockSpec((hw, Pp), c2),                        # stacked branch upsample
            pl.BlockSpec((cf_p, cp_p), c2),                    # bottleneck identity slice
            pl.BlockSpec((1, cp_p), c2),                       # bottleneck bias
            pl.BlockSpec((co8, cp_p), c2),                     # classifier weight^T
            pl.BlockSpec((co8, 1), c2),                        # classifier bias (col)
            pl.BlockSpec((co8 * H, h * co8), c2),              # final h-upsample (blocked)
            pl.BlockSpec((w, W), c2),                          # final w-upsample
        ],
        out_specs=pl.BlockSpec((1, co8, H, W), lambda i: (i, 0, 0, 0)),
        compiler_params=pltpu.CompilerParams(
            dimension_semantics=("parallel",),                 # batch -> both v7x TCs
            vmem_limit_bytes=vmem_limit),
    )(xs_p, model['wf'], model['bf'], pool_c, model['wpyr'], model['bpyr'],
      mask_c, model['wbstk'], up_c, model['wb0'], model['bb'],
      model['wclsT'], model['bclsT'], mh_c, uwT_c)

    # Output is already NCHW with classes on sublanes; just drop pad channels.
    return out_pad[:, :co]


if __name__ == "__main__":
    key = jax.random.PRNGKey(0)
    k_x, k_p = jax.random.split(key)

    batch, in_channels, H, W = 2, 4, 16, 16
    feature_channels, ppm_channels, out_channels = 8, 16, 5

    x = jax.random.normal(k_x, (batch, in_channels, H, W), jnp.float32)
    model, dims = init_model(k_p, in_channels, feature_channels, ppm_channels,
                             out_channels)

    fwd = jax.jit(functools.partial(pspnet_forward, dims=dims))
    y = jax.block_until_ready(fwd(x, model))

    assert y.shape == (batch, out_channels, H, W), y.shape
    assert bool(jnp.all(jnp.isfinite(y)))
    print("KERNEL_OK")
</pallas_src>

<mosaic_0001>
module attributes {stable_mosaic.version = 11 : i64} {
  func.func @_pspnet_kernel(%arg0: i32, %arg1: memref<1x64x4xbf16, #tpu.memory_space<vmem>>, %arg2: memref<4x128xbf16, #tpu.memory_space<vmem>>, %arg3: memref<1x128xf32, #tpu.memory_space<vmem>>, %arg4: memref<56x64xbf16, #tpu.memory_space<vmem>>, %arg5: memref<128x512xbf16, #tpu.memory_space<vmem>>, %arg6: memref<1x512xf32, #tpu.memory_space<vmem>>, %arg7: memref<56x512xbf16, #tpu.memory_space<vmem>>, %arg8: memref<512x128xbf16, #tpu.memory_space<vmem>>, %arg9: memref<64x56xbf16, #tpu.memory_space<vmem>>, %arg10: memref<128x128xbf16, #tpu.memory_space<vmem>>, %arg11: memref<1x128xf32, #tpu.memory_space<vmem>>, %arg12: memref<8x128xbf16, #tpu.memory_space<vmem>>, %arg13: memref<8x1xf32, #tpu.memory_space<vmem>>, %arg14: memref<128x64xbf16, #tpu.memory_space<vmem>>, %arg15: memref<8x16xbf16, #tpu.memory_space<vmem>>, %arg16: memref<1x8x16x16xf32, #tpu.memory_space<vmem>>) attributes {dimension_semantics = [#tpu.dimension_semantics<parallel>], iteration_bounds = array<i64: 2>, scalar_prefetch = 0 : i64, scratch_operands = 0 : i64, tpu.core_type = #tpu.core_type<tc>, window_params = [{transform_indices = @transform_0, window_bounds = array<i64: 1, 64, 4>}, {pipeline_mode = #tpu.pipeline_mode<synchronous>, transform_indices = @transform_1, window_bounds = array<i64: 4, 128>}, {pipeline_mode = #tpu.pipeline_mode<synchronous>, transform_indices = @transform_2, window_bounds = array<i64: 1, 128>}, {pipeline_mode = #tpu.pipeline_mode<synchronous>, transform_indices = @transform_3, window_bounds = array<i64: 56, 64>}, {pipeline_mode = #tpu.pipeline_mode<synchronous>, transform_indices = @transform_4, window_bounds = array<i64: 128, 512>}, {pipeline_mode = #tpu.pipeline_mode<synchronous>, transform_indices = @transform_5, window_bounds = array<i64: 1, 512>}, {pipeline_mode = #tpu.pipeline_mode<synchronous>, transform_indices = @transform_6, window_bounds = array<i64: 56, 512>}, {pipeline_mode = #tpu.pipeline_mode<synchronous>, transform_indices = @transform_7, window_bounds = array<i64: 512, 128>}, {pipeline_mode = #tpu.pipeline_mode<synchronous>, transform_indices = @transform_8, window_bounds = array<i64: 64, 56>}, {pipeline_mode = #tpu.pipeline_mode<synchronous>, transform_indices = @transform_9, window_bounds = array<i64: 128, 128>}, {pipeline_mode = #tpu.pipeline_mode<synchronous>, transform_indices = @transform_10, window_bounds = array<i64: 1, 128>}, {pipeline_mode = #tpu.pipeline_mode<synchronous>, transform_indices = @transform_11, window_bounds = array<i64: 8, 128>}, {pipeline_mode = #tpu.pipeline_mode<synchronous>, transform_indices = @transform_12, window_bounds = array<i64: 8, 1>}, {pipeline_mode = #tpu.pipeline_mode<synchronous>, transform_indices = @transform_13, window_bounds = array<i64: 128, 64>}, {pipeline_mode = #tpu.pipeline_mode<synchronous>, transform_indices = @transform_14, window_bounds = array<i64: 8, 16>}, {transform_indices = @transform_15, window_bounds = array<i64: 1, 8, 16, 16>}]} {
    %c0 = arith.constant 0 : index
    %c0_0 = arith.constant 0 : index
    %c0_1 = arith.constant 0 : index
    %0 = vector.load %arg1[%c0, %c0_0, %c0_1] : memref<1x64x4xbf16, #tpu.memory_space<vmem>>, vector<1x64x4xbf16>
    %1 = vector.shape_cast %0 : vector<1x64x4xbf16> to vector<64x4xbf16>
    %c0_2 = arith.constant 0 : index
    %c0_3 = arith.constant 0 : index
    %2 = vector.load %arg2[%c0_2, %c0_3] : memref<4x128xbf16, #tpu.memory_space<vmem>>, vector<4x128xbf16>
    %cst = arith.constant dense<0.000000e+00> : vector<64x128xf32>
    %3 = tpu.matmul %1, %2, %cst {dimension_numbers = #tpu.dot_dimension_numbers<[1], [0], [0], [1], [0, 0, 1, 1], [], []>} : vector<64x4xbf16>, vector<4x128xbf16>, vector<64x128xf32> -> vector<64x128xf32>
    %c0_4 = arith.constant 0 : index
    %c0_5 = arith.constant 0 : index
    %4 = vector.load %arg3[%c0_4, %c0_5] : memref<1x128xf32, #tpu.memory_space<vmem>>, vector<1x128xf32>
    %5 = vector.broadcast %4 : vector<1x128xf32> to vector<64x128xf32>
    %6 = arith.addf %3, %5 : vector<64x128xf32>
    %cst_6 = arith.constant 0.000000e+00 : f32
    %7 = vector.broadcast %cst_6 : f32 to vector<64x128xf32>
    %8 = arith.maximumf %6, %7 : vector<64x128xf32>
    %9 = arith.truncf %8 : vector<64x128xf32> to vector<64x128xbf16>
    %c0_7 = arith.constant 0 : index
    %c0_8 = arith.constant 0 : index
    %10 = vector.load %arg4[%c0_7, %c0_8] : memref<56x64xbf16, #tpu.memory_space<vmem>>, vector<56x64xbf16>
    %cst_9 = arith.constant dense<0.000000e+00> : vector<56x128xf32>
    %11 = tpu.matmul %10, %9, %cst_9 {dimension_numbers = #tpu.dot_dimension_numbers<[1], [0], [0], [1], [0, 0, 1, 1], [], []>} : vector<56x64xbf16>, vector<64x128xbf16>, vector<56x128xf32> -> vector<56x128xf32>
    %12 = arith.truncf %11 : vector<56x128xf32> to vector<56x128xbf16>
    %c0_10 = arith.constant 0 : index
    %c0_11 = arith.constant 0 : index
    %13 = vector.load %arg5[%c0_10, %c0_11] : memref<128x512xbf16, #tpu.memory_space<vmem>>, vector<128x512xbf16>
    %cst_12 = arith.constant dense<0.000000e+00> : vector<56x512xf32>
    %14 = tpu.matmul %12, %13, %cst_12 {dimension_numbers = #tpu.dot_dimension_numbers<[1], [0], [0], [1], [0, 0, 1, 1], [], []>} : vector<56x128xbf16>, vector<128x512xbf16>, vector<56x512xf32> -> vector<56x512xf32>
    %c0_13 = arith.constant 0 : index
    %c0_14 = arith.constant 0 : index
    %15 = vector.load %arg7[%c0_13, %c0_14] : memref<56x512xbf16, #tpu.memory_space<vmem>>, vector<56x512xbf16>
    %cst_15 = arith.constant 0.000000e+00 : bf16
    %16 = vector.broadcast %cst_15 : bf16 to vector<56x512xbf16>
    %17 = arith.cmpf ogt, %15, %16 : vector<56x512xbf16>
    %c0_16 = arith.constant 0 : index
    %c0_17 = arith.constant 0 : index
    %18 = vector.load %arg6[%c0_16, %c0_17] : memref<1x512xf32, #tpu.memory_space<vmem>>, vector<1x512xf32>
    %19 = vector.broadcast %18 : vector<1x512xf32> to vector<56x512xf32>
    %20 = arith.addf %14, %19 : vector<56x512xf32>
    %cst_18 = arith.constant 0.000000e+00 : f32
    %21 = vector.broadcast %cst_18 : f32 to vector<56x512xf32>
    %22 = arith.maximumf %20, %21 : vector<56x512xf32>
    %cst_19 = arith.constant 0.000000e+00 : f32
    %23 = vector.broadcast %cst_19 : f32 to vector<56x512xf32>
    %24 = arith.select %17, %22, %23 : vector<56x512xi1>, vector<56x512xf32>
    %25 = arith.truncf %24 : vector<56x512xf32> to vector<56x512xbf16>
    %c0_20 = arith.constant 0 : index
    %c0_21 = arith.constant 0 : index
    %26 = vector.load %arg8[%c0_20, %c0_21] : memref<512x128xbf16, #tpu.memory_space<vmem>>, vector<512x128xbf16>
    %cst_22 = arith.constant dense<0.000000e+00> : vector<56x128xf32>
    %27 = tpu.matmul %25, %26, %cst_22 {dimension_numbers = #tpu.dot_dimension_numbers<[1], [0], [0], [1], [0, 0, 1, 1], [], []>} : vector<56x512xbf16>, vector<512x128xbf16>, vector<56x128xf32> -> vector<56x128xf32>
    %c0_23 = arith.constant 0 : index
    %c0_24 = arith.constant 0 : index
    %28 = vector.load %arg9[%c0_23, %c0_24] : memref<64x56xbf16, #tpu.memory_space<vmem>>, vector<64x56xbf16>
    %29 = arith.truncf %27 : vector<56x128xf32> to vector<56x128xbf16>
    %cst_25 = arith.constant dense<0.000000e+00> : vector<64x128xf32>
    %30 = tpu.matmul %28, %29, %cst_25 {dimension_numbers = #tpu.dot_dimension_numbers<[1], [0], [0], [1], [0, 0, 1, 1], [], []>} : vector<64x56xbf16>, vector<56x128xbf16>, vector<64x128xf32> -> vector<64x128xf32>
    %c0_26 = arith.constant 0 : index
    %c0_27 = arith.constant 0 : index
    %31 = vector.load %arg10[%c0_26, %c0_27] : memref<128x128xbf16, #tpu.memory_space<vmem>>, vector<128x128xbf16>
    %cst_28 = arith.constant dense<0.000000e+00> : vector<64x128xf32>
    %32 = tpu.matmul %9, %31, %cst_28 {dimension_numbers = #tpu.dot_dimension_numbers<[1], [0], [0], [1], [0, 0, 1, 1], [], []>} : vector<64x128xbf16>, vector<128x128xbf16>, vector<64x128xf32> -> vector<64x128xf32>
    %33 = arith.addf %32, %30 : vector<64x128xf32>
    %c0_29 = arith.constant 0 : index
    %c0_30 = arith.constant 0 : index
    %34 = vector.load %arg11[%c0_29, %c0_30] : memref<1x128xf32, #tpu.memory_space<vmem>>, vector<1x128xf32>
    %35 = vector.broadcast %34 : vector<1x128xf32> to vector<64x128xf32>
    %36 = arith.addf %33, %35 : vector<64x128xf32>
    %cst_31 = arith.constant 0.000000e+00 : f32
    %37 = vector.broadcast %cst_31 : f32 to vector<64x128xf32>
    %38 = arith.maximumf %36, %37 : vector<64x128xf32>
    %39 = vector.shape_cast %38 : vector<64x128xf32> to vector<8x8x128xf32>
    %40 = arith.truncf %39 : vector<8x8x128xf32> to vector<8x8x128xbf16>
    %c0_32 = arith.constant 0 : index
    %c0_33 = arith.constant 0 : index
    %41 = vector.load %arg12[%c0_32, %c0_33] : memref<8x128xbf16, #tpu.memory_space<vmem>>, vector<8x128xbf16>
    %42 = vector.shape_cast %41 : vector<8x128xbf16> to vector<1x8x128xbf16>
    %43 = vector.broadcast %42 : vector<1x8x128xbf16> to vector<8x8x128xbf16>
    %cst_34 = arith.constant dense<0.000000e+00> : vector<8x8x8xf32>
    %44 = tpu.matmul %43, %40, %cst_34 {dimension_numbers = #tpu.dot_dimension_numbers<[2], [2], [1], [1], [0, 0, 0, 1, 1, 1], [0], [0]>} : vector<8x8x128xbf16>, vector<8x8x128xbf16>, vector<8x8x8xf32> -> vector<8x8x8xf32>
    %c0_35 = arith.constant 0 : index
    %c0_36 = arith.constant 0 : index
    %45 = vector.load %arg13[%c0_35, %c0_36] : memref<8x1xf32, #tpu.memory_space<vmem>>, vector<8x1xf32>
    %46 = vector.shape_cast %45 : vector<8x1xf32> to vector<1x8x1xf32>
    %47 = vector.broadcast %46 : vector<1x8x1xf32> to vector<8x8x8xf32>
    %48 = arith.addf %44, %47 : vector<8x8x8xf32>
    %c0_37 = arith.constant 0 : index
    %c0_38 = arith.constant 0 : index
    %49 = vector.load %arg14[%c0_37, %c0_38] : memref<128x64xbf16, #tpu.memory_space<vmem>>, vector<128x64xbf16>
    %50 = vector.shape_cast %48 : vector<8x8x8xf32> to vector<64x8xf32>
    %51 = arith.truncf %50 : vector<64x8xf32> to vector<64x8xbf16>
    %cst_39 = arith.constant dense<0.000000e+00> : vector<128x8xf32>
    %52 = tpu.matmul %49, %51, %cst_39 {dimension_numbers = #tpu.dot_dimension_numbers<[1], [0], [0], [1], [0, 0, 1, 1], [], []>} : vector<128x64xbf16>, vector<64x8xbf16>, vector<128x8xf32> -> vector<128x8xf32>
    %53 = arith.truncf %52 : vector<128x8xf32> to vector<128x8xbf16>
    %c0_40 = arith.constant 0 : index
    %c0_41 = arith.constant 0 : index
    %54 = vector.load %arg15[%c0_40, %c0_41] : memref<8x16xbf16, #tpu.memory_space<vmem>>, vector<8x16xbf16>
    %cst_42 = arith.constant dense<0.000000e+00> : vector<128x16xf32>
    %55 = tpu.matmul %53, %54, %cst_42 {dimension_numbers = #tpu.dot_dimension_numbers<[1], [0], [0], [1], [0, 0, 1, 1], [], []>} : vector<128x8xbf16>, vector<8x16xbf16>, vector<128x16xf32> -> vector<128x16xf32>
    %56 = vector.shape_cast %55 : vector<128x16xf32> to vector<8x16x16xf32>
    %c0_43 = arith.constant 0 : index
    %c0_44 = arith.constant 0 : index
    %c0_45 = arith.constant 0 : index
    %c0_46 = arith.constant 0 : index
    %57 = vector.load %arg16[%c0_43, %c0_44, %c0_45, %c0_46] : memref<1x8x16x16xf32, #tpu.memory_space<vmem>>, vector<1x8x16x16xf32>
    %58 = vector.shape_cast %57 : vector<1x8x16x16xf32> to vector<8x16x16xf32>
    %59 = vector.shape_cast %56 : vector<8x16x16xf32> to vector<1x8x16x16xf32>
    tpu.vector_store %arg16[%c0_43, %c0_44, %c0_45, %c0_46], %59 {strides = array<i32>} : memref<1x8x16x16xf32, #tpu.memory_space<vmem>>, vector<1x8x16x16xf32>,
    return
  }
  func.func @transform_0(%arg0: i32) -> (i32, i32, i32) {
    %c0_i32 = arith.constant 0 : i32
    %c0_i32_0 = arith.constant 0 : i32
    %c0_i32_1 = arith.constant 0 : i32
    return %arg0, %c0_i32, %c0_i32_0 : i32, i32, i32
  }
  func.func @transform_1(%arg0: i32) -> (i32, i32) {
    %c0_i32 = arith.constant 0 : i32
    %c0_i32_0 = arith.constant 0 : i32
    %c0_i32_1 = arith.constant 0 : i32
    return %c0_i32, %c0_i32_0 : i32, i32
  }
  func.func @transform_2(%arg0: i32) -> (i32, i32) {
    %c0_i32 = arith.constant 0 : i32
    %c0_i32_0 = arith.constant 0 : i32
    %c0_i32_1 = arith.constant 0 : i32
    return %c0_i32, %c0_i32_0 : i32, i32
  }
  func.func @transform_3(%arg0: i32) -> (i32, i32) {
    %c0_i32 = arith.constant 0 : i32
    %c0_i32_0 = arith.constant 0 : i32
    %c0_i32_1 = arith.constant 0 : i32
    return %c0_i32, %c0_i32_0 : i32, i32
  }
  func.func @transform_4(%arg0: i32) -> (i32, i32) {
    %c0_i32 = arith.constant 0 : i32
    %c0_i32_0 = arith.constant 0 : i32
    %c0_i32_1 = arith.constant 0 : i32
    return %c0_i32, %c0_i32_0 : i32, i32
  }
  func.func @transform_5(%arg0: i32) -> (i32, i32) {
    %c0_i32 = arith.constant 0 : i32
    %c0_i32_0 = arith.constant 0 : i32
    %c0_i32_1 = arith.constant 0 : i32
    return %c0_i32, %c0_i32_0 : i32, i32
  }
  func.func @transform_6(%arg0: i32) -> (i32, i32) {
    %c0_i32 = arith.constant 0 : i32
    %c0_i32_0 = arith.constant 0 : i32
    %c0_i32_1 = arith.constant 0 : i32
    return %c0_i32, %c0_i32_0 : i32, i32
  }
  func.func @transform_7(%arg0: i32) -> (i32, i32) {
    %c0_i32 = arith.constant 0 : i32
    %c0_i32_0 = arith.constant 0 : i32
    %c0_i32_1 = arith.constant 0 : i32
    return %c0_i32, %c0_i32_0 : i32, i32
  }
  func.func @transform_8(%arg0: i32) -> (i32, i32) {
    %c0_i32 = arith.constant 0 : i32
    %c0_i32_0 = arith.constant 0 : i32
    %c0_i32_1 = arith.constant 0 : i32
    return %c0_i32, %c0_i32_0 : i32, i32
  }
  func.func @transform_9(%arg0: i32) -> (i32, i32) {
    %c0_i32 = arith.constant 0 : i32
    %c0_i32_0 = arith.constant 0 : i32
    %c0_i32_1 = arith.constant 0 : i32
    return %c0_i32, %c0_i32_0 : i32, i32
  }
  func.func @transform_10(%arg0: i32) -> (i32, i32) {
    %c0_i32 = arith.constant 0 : i32
    %c0_i32_0 = arith.constant 0 : i32
    %c0_i32_1 = arith.constant 0 : i32
    return %c0_i32, %c0_i32_0 : i32, i32
  }
  func.func @transform_11(%arg0: i32) -> (i32, i32) {
    %c0_i32 = arith.constant 0 : i32
    %c0_i32_0 = arith.constant 0 : i32
    %c0_i32_1 = arith.constant 0 : i32
    return %c0_i32, %c0_i32_0 : i32, i32
  }
  func.func @transform_12(%arg0: i32) -> (i32, i32) {
    %c0_i32 = arith.constant 0 : i32
    %c0_i32_0 = arith.constant 0 : i32
    %c0_i32_1 = arith.constant 0 : i32
    return %c0_i32, %c0_i32_0 : i32, i32
  }
  func.func @transform_13(%arg0: i32) -> (i32, i32) {
    %c0_i32 = arith.constant 0 : i32
    %c0_i32_0 = arith.constant 0 : i32
    %c0_i32_1 = arith.constant 0 : i32
    return %c0_i32, %c0_i32_0 : i32, i32
  }
  func.func @transform_14(%arg0: i32) -> (i32, i32) {
    %c0_i32 = arith.constant 0 : i32
    %c0_i32_0 = arith.constant 0 : i32
    %c0_i32_1 = arith.constant 0 : i32
    return %c0_i32, %c0_i32_0 : i32, i32
  }
  func.func @transform_15(%arg0: i32) -> (i32, i32, i32, i32) {
    %c0_i32 = arith.constant 0 : i32
    %c0_i32_0 = arith.constant 0 : i32
    %c0_i32_1 = arith.constant 0 : i32
    %c0_i32_2 = arith.constant 0 : i32
    return %arg0, %c0_i32, %c0_i32_0, %c0_i32_1 : i32, i32, i32, i32
  }
}

</mosaic_0001>

<llo_original>
// kernel: pspnet_forward.1
$region0: #{pspnet_forward.1}
  #allocation0 [shape = 'u32[]', space=smem, size = 0x4, offset = 0x4, fixed_abs, tag = 'smem constant byte address 0x4 - core index']
  #allocation1 [shape = 'u32[144,128]{1,0:T(1,128)}', space=vmem, size = 0x12000, scoped, tag = 'internal scratch']
  %s0 = inlined_call_operand.vmem [shape: bf16[2,64,4], index: 0, kind: input, shape index: {}]
  %s1 = inlined_call_operand.vmem [shape: bf16[4,128], index: 1, kind: input, shape index: {}]
  %s2 = inlined_call_operand.vmem [shape: f32[1,128], index: 2, kind: input, shape index: {}]
  %s3 = inlined_call_operand.hbm [shape: bf16[56,64], index: 3, kind: input, shape index: {}]
  %s4 = inlined_call_operand.vmem [shape: bf16[128,512], index: 4, kind: input, shape index: {}]
  %s5 = inlined_call_operand.vmem [shape: f32[1,512], index: 5, kind: input, shape index: {}]
  %s6 = inlined_call_operand.vmem [shape: bf16[56,512], index: 6, kind: input, shape index: {}]
  %s7 = inlined_call_operand.hbm [shape: bf16[512,128], index: 7, kind: input, shape index: {}]
  %s8 = inlined_call_operand.hbm [shape: bf16[64,56], index: 8, kind: input, shape index: {}]
  %s9 = inlined_call_operand.hbm [shape: bf16[128,128], index: 9, kind: input, shape index: {}]
  %s10 = inlined_call_operand.hbm [shape: f32[1,128], index: 10, kind: input, shape index: {}]
  %s11 = inlined_call_operand.vmem [shape: bf16[8,128], index: 11, kind: input, shape index: {}]
  %s12 = inlined_call_operand.vmem [shape: f32[8,1], index: 12, kind: input, shape index: {}]
  %s13 = inlined_call_operand.hbm [shape: bf16[128,64], index: 13, kind: input, shape index: {}]
  %s14 = inlined_call_operand.vmem [shape: bf16[8,16], index: 14, kind: input, shape index: {}]
  %s15 = inlined_call_operand.vmem [shape: f32[2,8,16,16], index: 15, kind: output, shape index: {}]
  %s16 = sld [smem:[#allocation0]]
  $region117: #{pspnet_forward.1} parent=0
    _
  %s18 = ssub.s32 1, %s16
  %s19 = scalar_select 0, %s18, %s16
  $region1: #{pspnet_forward.1} parent=0
    #allocation2 [shape = 'u8[14336]{0}', space=vmem, size = 0x3800, scoped, tag = 'input window, operand 3, single buffered']
    #allocation3 [shape = 's32[2]{0}', space=sflag, size = 0x8, scoped, tag = 'scoped memory for pspnet_forward.1']
    #allocation4 [shape = 'u8[131072]{0}', space=vmem, size = 0x20000, scoped, tag = 'input window, operand 7, single buffered']
    #allocation5 [shape = 's32[1]{0}', space=sflag, size = 0x4, scoped, tag = 'scoped memory for pspnet_forward.1']
    #allocation6 [shape = 'u8[16384]{0}', space=vmem, size = 0x4000, scoped, tag = 'input window, operand 8, single buffered']
    #allocation7 [shape = 'u8[32768]{0}', space=vmem, size = 0x8000, scoped, tag = 'input window, operand 9, single buffered']
    #allocation8 [shape = 's32[1]{0}', space=sflag, size = 0x4, scoped, tag = 'scoped memory for pspnet_forward.1']
    #allocation9 [shape = 'u8[512]{0}', space=vmem, size = 0x400, scoped, tag = 'input window, operand 10, single buffered']
    #allocation10 [shape = 'u8[32768]{0}', space=vmem, size = 0x8000, scoped, tag = 'input window, operand 13, single buffered']
    #allocation11 [shape = 's32[1]{0}', space=sflag, size = 0x4, scoped, tag = 'scoped memory for pspnet_forward.1']
    %20 = vsyncpa [#allocation3], 0
    %21 = vsyncpa [#allocation5], 0
    %22 = vsyncpa [#allocation8], 0
    %23 = vsyncpa [#allocation11], 0
    loop: start=0, step=1, limit=4
    $region2: #{pspnet_forward.1} parent=1 // loop_pre_header
      _
    $region3: #{pspnet_forward.1} parent=1 // loop_header
      %s25 = sphi 0, %s29
      %p26 = scmp.ge.s32.totalorder %s25, 4
      %s35 = sphi 0, %s37
      %s38 = sphi 0, %s35
      %s39 = sphi 0, %s38
      %s55 = sphi 0, %s39
      %s59 = sphi 0, %s59
      %s61 = sphi 0, %s59
      %s62 = sphi 0, %s61
      %s76 = sphi 0, %s62
      %s80 = sphi 0, %s80
      %s82 = sphi 0, %s80
      %s83 = sphi 0, %s82
      %s97 = sphi 0, %s83
      %s101 = sphi 0, %s101
      %s103 = sphi 0, %s101
      %s104 = sphi 0, %s103
      %s118 = sphi 0, %s104
      %s122 = sphi 0, %s122
      %s124 = sphi 0, %s122
      %s125 = sphi 0, %s124
      %s139 = sphi 0, %s125
      %s143 = sphi 0, %s143
      %s145 = sphi 0, %s143
      %s146 = sphi 0, %s145
      %s160 = sphi 0, %s146
      %s164 = sphi 0, %s164
      %s166 = sphi 0, %s164
      %s167 = sphi 0, %s166
      %s181 = sphi 0, %s167
      %s185 = sphi 0, %s185
      %s187 = sphi 0, %s185
      %s188 = sphi 0, %s187
      %s202 = sphi 0, %s188
      %s206 = sphi 0, %s206
      %s208 = sphi 0, %s206
      %s209 = sphi 0, %s208
      %s223 = sphi 0, %s209
      %s227 = sphi 0, %s227
      %s229 = sphi 0, %s227
      %s230 = sphi 0, %s229
      %s244 = sphi 0, %s230
      %s248 = sphi 0, %s248
      %s250 = sphi 0, %s248
      %s251 = sphi 0, %s250
      %s265 = sphi 0, %s251
      %s269 = sphi 0, %s269
      %s271 = sphi 0, %s269
      %s272 = sphi 0, %s271
      %s286 = sphi 0, %s272
      %s290 = sphi 0, %s290
      %s292 = sphi 0, %s290
      %s293 = sphi 0, %s292
      %s307 = sphi 0, %s293
      %s311 = sphi 0, %s311
      %s313 = sphi 0, %s311
      %s314 = sphi 0, %s313
      %s328 = sphi 0, %s314
      %s332 = sphi 0, %s332
      %s334 = sphi 0, %s332
      %s335 = sphi 0, %s334
      %s349 = sphi 0, %s335
      %s355 = sphi 0, %s357
      %s358 = sphi 0, %s355
      %s359 = sphi 0, %s358
      %s375 = sphi 0, %s359
    $region4: #{pspnet_forward.1} parent=1 // loop_header_branch
      %28 = sbr.rel (%p26) target = $region8
    $region5: #{pspnet_forward.1} parent=1 // loop_body
      %s30 = ssub.s32 %s25, 1
      %s31 = ssub.s32 %s25, 2
      %s32 = sadd.s32 %s25, 1
      %s33 = ssub.s32 %s25, %s32
      %p34 = scmp.eq.s32.totalorder %s33, 0
      %s36 = sadd.s32 %s35, 1
      %s37 = scalar_select %p34, %s35, %s36
      %p40 = pneg %p34
      %p41 = scmp.eq.s32.totalorder %s25, 1
      %p42 = por %p40, %p41
      %p43 = scmp.ne.s32.totalorder %s35, %s38
      %p44 = scmp.eq.s32.totalorder %s25, 0
      %p45 = por %p43, %p44
      %p46 = scmp.ne.s32.totalorder %s35, %s38
      %p47 = scmp.eq.s32.totalorder %s30, 1
      %p48 = por %p46, %p47
      %p49 = scmp.ne.s32.totalorder %s38, %s39
      %p50 = scmp.eq.s32.totalorder %s30, 0
      %p51 = por %p49, %p50
      %p52 = scmp.ne.s32.totalorder %s38, %s39
      %p53 = scmp.eq.s32.totalorder %s31, 1
      %p54 = por %p52, %p53
      %p56 = scmp.ne.s32.totalorder %s39, %s55
      %p57 = scmp.eq.s32.totalorder %s31, 0
      %p58 = por %p56, %p57
      %s60 = sadd.s32 %s59, 1
      %p63 = scmp.eq.s32.totalorder %s25, 1
      %p64 = scmp.ne.s32.totalorder %s59, %s61
      %p65 = scmp.eq.s32.totalorder %s25, 0
      %p66 = por %p64, %p65
      %p67 = scmp.ne.s32.totalorder %s59, %s61
      %p68 = scmp.eq.s32.totalorder %s30, 1
      %p69 = por %p67, %p68
      %p70 = scmp.ne.s32.totalorder %s61, %s62
      %p71 = scmp.eq.s32.totalorder %s30, 0
      %p72 = por %p70, %p71
      %p73 = scmp.ne.s32.totalorder %s61, %s62
      %p74 = scmp.eq.s32.totalorder %s31, 1
      %p75 = por %p73, %p74
      %p77 = scmp.ne.s32.totalorder %s62, %s76
      %p78 = scmp.eq.s32.totalorder %s31, 0
      %p79 = por %p77, %p78
      %s81 = sadd.s32 %s80, 1
      %p84 = scmp.eq.s32.totalorder %s25, 1
      %p85 = scmp.ne.s32.totalorder %s80, %s82
      %p86 = scmp.eq.s32.totalorder %s25, 0
      %p87 = por %p85, %p86
      %p88 = scmp.ne.s32.totalorder %s80, %s82
      %p89 = scmp.eq.s32.totalorder %s30, 1
      %p90 = por %p88, %p89
      %p91 = scmp.ne.s32.totalorder %s82, %s83
      %p92 = scmp.eq.s32.totalorder %s30, 0
      %p93 = por %p91, %p92
      %p94 = scmp.ne.s32.totalorder %s82, %s83
      %p95 = scmp.eq.s32.totalorder %s31, 1
      %p96 = por %p94, %p95
      %p98 = scmp.ne.s32.totalorder %s83, %s97
      %p99 = scmp.eq.s32.totalorder %s31, 0
      %p100 = por %p98, %p99
      %s102 = sadd.s32 %s101, 1
      %p105 = scmp.eq.s32.totalorder %s25, 1
      %p106 = scmp.ne.s32.totalorder %s101, %s103
      %p107 = scmp.eq.s32.totalorder %s25, 0
      %p108 = por %p106, %p107
      %p109 = scmp.ne.s32.totalorder %s101, %s103
      %p110 = scmp.eq.s32.totalorder %s30, 1
      %p111 = por %p109, %p110
      %p112 = scmp.ne.s32.totalorder %s103, %s104
      %p113 = scmp.eq.s32.totalorder %s30, 0
      %p114 = por %p112, %p113
      %p115 = scmp.ne.s32.totalorder %s103, %s104
      %p116 = scmp.eq.s32.totalorder %s31, 1
      %p117 = por %p115, %p116
      %p119 = scmp.ne.s32.totalorder %s104, %s118
      %p120 = scmp.eq.s32.totalorder %s31, 0
      %p121 = por %p119, %p120
      %s123 = sadd.s32 %s122, 1
      %p126 = scmp.eq.s32.totalorder %s25, 1
      %p127 = scmp.ne.s32.totalorder %s122, %s124
      %p128 = scmp.eq.s32.totalorder %s25, 0
      %p129 = por %p127, %p128
      %p130 = scmp.ne.s32.totalorder %s122, %s124
      %p131 = scmp.eq.s32.totalorder %s30, 1
      %p132 = por %p130, %p131
      %p133 = scmp.ne.s32.totalorder %s124, %s125
      %p134 = scmp.eq.s32.totalorder %s30, 0
      %p135 = por %p133, %p134
      %p136 = scmp.ne.s32.totalorder %s124, %s125
      %p137 = scmp.eq.s32.totalorder %s31, 1
      %p138 = por %p136, %p137
      %p140 = scmp.ne.s32.totalorder %s125, %s139
      %p141 = scmp.eq.s32.totalorder %s31, 0
      %p142 = por %p140, %p141
      %s144 = sadd.s32 %s143, 1
      %p147 = scmp.eq.s32.totalorder %s25, 1
      %p148 = scmp.ne.s32.totalorder %s143, %s145
      %p149 = scmp.eq.s32.totalorder %s25, 0
      %p150 = por %p148, %p149
      %p151 = scmp.ne.s32.totalorder %s143, %s145
      %p152 = scmp.eq.s32.totalorder %s30, 1
      %p153 = por %p151, %p152
      %p154 = scmp.ne.s32.totalorder %s145, %s146
      %p155 = scmp.eq.s32.totalorder %s30, 0
      %p156 = por %p154, %p155
      %p157 = scmp.ne.s32.totalorder %s145, %s146
      %p158 = scmp.eq.s32.totalorder %s31, 1
      %p159 = por %p157, %p158
      %p161 = scmp.ne.s32.totalorder %s146, %s160
      %p162 = scmp.eq.s32.totalorder %s31, 0
      %p163 = por %p161, %p162
      %s165 = sadd.s32 %s164, 1
      %p168 = scmp.eq.s32.totalorder %s25, 1
      %p169 = scmp.ne.s32.totalorder %s164, %s166
      %p170 = scmp.eq.s32.totalorder %s25, 0
      %p171 = por %p169, %p170
      %p172 = scmp.ne.s32.totalorder %s164, %s166
      %p173 = scmp.eq.s32.totalorder %s30, 1
      %p174 = por %p172, %p173
      %p175 = scmp.ne.s32.totalorder %s166, %s167
      %p176 = scmp.eq.s32.totalorder %s30, 0
      %p177 = por %p175, %p176
      %p178 = scmp.ne.s32.totalorder %s166, %s167
      %p179 = scmp.eq.s32.totalorder %s31, 1
      %p180 = por %p178, %p179
      %p182 = scmp.ne.s32.totalorder %s167, %s181
      %p183 = scmp.eq.s32.totalorder %s31, 0
      %p184 = por %p182, %p183
      %s186 = sadd.s32 %s185, 1
      %p189 = scmp.eq.s32.totalorder %s25, 1
      %p190 = scmp.ne.s32.totalorder %s185, %s187
      %p191 = scmp.eq.s32.totalorder %s25, 0
      %p192 = por %p190, %p191
      %p193 = scmp.ne.s32.totalorder %s185, %s187
      %p194 = scmp.eq.s32.totalorder %s30, 1
      %p195 = por %p193, %p194
      %p196 = scmp.ne.s32.totalorder %s187, %s188
      %p197 = scmp.eq.s32.totalorder %s30, 0
      %p198 = por %p196, %p197
      %p199 = scmp.ne.s32.totalorder %s187, %s188
      %p200 = scmp.eq.s32.totalorder %s31, 1
      %p201 = por %p199, %p200
      %p203 = scmp.ne.s32.totalorder %s188, %s202
      %p204 = scmp.eq.s32.totalorder %s31, 0
      %p205 = por %p203, %p204
      %s207 = sadd.s32 %s206, 1
      %p210 = scmp.eq.s32.totalorder %s25, 1
      %p211 = scmp.ne.s32.totalorder %s206, %s208
      %p212 = scmp.eq.s32.totalorder %s25, 0
      %p213 = por %p211, %p212
      %p214 = scmp.ne.s32.totalorder %s206, %s208
      %p215 = scmp.eq.s32.totalorder %s30, 1
      %p216 = por %p214, %p215
      %p217 = scmp.ne.s32.totalorder %s208, %s209
      %p218 = scmp.eq.s32.totalorder %s30, 0
      %p219 = por %p217, %p218
      %p220 = scmp.ne.s32.totalorder %s208, %s209
      %p221 = scmp.eq.s32.totalorder %s31, 1
      %p222 = por %p220, %p221
      %p224 = scmp.ne.s32.totalorder %s209, %s223
      %p225 = scmp.eq.s32.totalorder %s31, 0
      %p226 = por %p224, %p225
      %s228 = sadd.s32 %s227, 1
      %p231 = scmp.eq.s32.totalorder %s25, 1
      %p232 = scmp.ne.s32.totalorder %s227, %s229
      %p233 = scmp.eq.s32.totalorder %s25, 0
      %p234 = por %p232, %p233
      %p235 = scmp.ne.s32.totalorder %s227, %s229
      %p236 = scmp.eq.s32.totalorder %s30, 1
      %p237 = por %p235, %p236
      %p238 = scmp.ne.s32.totalorder %s229, %s230
      %p239 = scmp.eq.s32.totalorder %s30, 0
      %p240 = por %p238, %p239
      %p241 = scmp.ne.s32.totalorder %s229, %s230
      %p242 = scmp.eq.s32.totalorder %s31, 1
      %p243 = por %p241, %p242
      %p245 = scmp.ne.s32.totalorder %s230, %s244
      %p246 = scmp.eq.s32.totalorder %s31, 0
      %p247 = por %p245, %p246
      %s249 = sadd.s32 %s248, 1
      %p252 = scmp.eq.s32.totalorder %s25, 1
      %p253 = scmp.ne.s32.totalorder %s248, %s250
      %p254 = scmp.eq.s32.totalorder %s25, 0
      %p255 = por %p253, %p254
      %p256 = scmp.ne.s32.totalorder %s248, %s250
      %p257 = scmp.eq.s32.totalorder %s30, 1
      %p258 = por %p256, %p257
      %p259 = scmp.ne.s32.totalorder %s250, %s251
      %p260 = scmp.eq.s32.totalorder %s30, 0
      %p261 = por %p259, %p260
      %p262 = scmp.ne.s32.totalorder %s250, %s251
      %p263 = scmp.eq.s32.totalorder %s31, 1
      %p264 = por %p262, %p263
      %p266 = scmp.ne.s32.totalorder %s251, %s265
      %p267 = scmp.eq.s32.totalorder %s31, 0
      %p268 = por %p266, %p267
      %s270 = sadd.s32 %s269, 1
      %p273 = scmp.eq.s32.totalorder %s25, 1
      %p274 = scmp.ne.s32.totalorder %s269, %s271
      %p275 = scmp.eq.s32.totalorder %s25, 0
      %p276 = por %p274, %p275
      %p277 = scmp.ne.s32.totalorder %s269, %s271
      %p278 = scmp.eq.s32.totalorder %s30, 1
      %p279 = por %p277, %p278
      %p280 = scmp.ne.s32.totalorder %s271, %s272
      %p281 = scmp.eq.s32.totalorder %s30, 0
      %p282 = por %p280, %p281
      %p283 = scmp.ne.s32.totalorder %s271, %s272
      %p284 = scmp.eq.s32.totalorder %s31, 1
      %p285 = por %p283, %p284
      %p287 = scmp.ne.s32.totalorder %s272, %s286
      %p288 = scmp.eq.s32.totalorder %s31, 0
      %p289 = por %p287, %p288
      %s291 = sadd.s32 %s290, 1
      %p294 = scmp.eq.s32.totalorder %s25, 1
      %p295 = scmp.ne.s32.totalorder %s290, %s292
      %p296 = scmp.eq.s32.totalorder %s25, 0
      %p297 = por %p295, %p296
      %p298 = scmp.ne.s32.totalorder %s290, %s292
      %p299 = scmp.eq.s32.totalorder %s30, 1
      %p300 = por %p298, %p299
      %p301 = scmp.ne.s32.totalorder %s292, %s293
      %p302 = scmp.eq.s32.totalorder %s30, 0
      %p303 = por %p301, %p302
      %p304 = scmp.ne.s32.totalorder %s292, %s293
      %p305 = scmp.eq.s32.totalorder %s31, 1
      %p306 = por %p304, %p305
      %p308 = scmp.ne.s32.totalorder %s293, %s307
      %p309 = scmp.eq.s32.totalorder %s31, 0
      %p310 = por %p308, %p309
      %s312 = sadd.s32 %s311, 1
      %p315 = scmp.eq.s32.totalorder %s25, 1
      %p316 = scmp.ne.s32.totalorder %s311, %s313
      %p317 = scmp.eq.s32.totalorder %s25, 0
      %p318 = por %p316, %p317
      %p319 = scmp.ne.s32.totalorder %s311, %s313
      %p320 = scmp.eq.s32.totalorder %s30, 1
      %p321 = por %p319, %p320
      %p322 = scmp.ne.s32.totalorder %s313, %s314
      %p323 = scmp.eq.s32.totalorder %s30, 0
      %p324 = por %p322, %p323
      %p325 = scmp.ne.s32.totalorder %s313, %s314
      %p326 = scmp.eq.s32.totalorder %s31, 1
      %p327 = por %p325, %p326
      %p329 = scmp.ne.s32.totalorder %s314, %s328
      %p330 = scmp.eq.s32.totalorder %s31, 0
      %p331 = por %p329, %p330
      %s333 = sadd.s32 %s332, 1
      %p336 = scmp.eq.s32.totalorder %s25, 1
      %p337 = scmp.ne.s32.totalorder %s332, %s334
      %p338 = scmp.eq.s32.totalorder %s25, 0
      %p339 = por %p337, %p338
      %p340 = scmp.ne.s32.totalorder %s332, %s334
      %p341 = scmp.eq.s32.totalorder %s30, 1
      %p342 = por %p340, %p341
      %p343 = scmp.ne.s32.totalorder %s334, %s335
      %p344 = scmp.eq.s32.totalorder %s30, 0
      %p345 = por %p343, %p344
      %p346 = scmp.ne.s32.totalorder %s334, %s335
      %p347 = scmp.eq.s32.totalorder %s31, 1
      %p348 = por %p346, %p347
      %p350 = scmp.ne.s32.totalorder %s335, %s349
      %p351 = scmp.eq.s32.totalorder %s31, 0
      %p352 = por %p350, %p351
      %s353 = ssub.s32 %s25, %s32
      %p354 = scmp.eq.s32.totalorder %s353, 0
      %s356 = sadd.s32 %s355, 1
      %s357 = scalar_select %p354, %s355, %s356
      %p360 = pneg %p354
      %p361 = scmp.eq.s32.totalorder %s25, 1
      %p362 = por %p360, %p361
      %p363 = scmp.ne.s32.totalorder %s355, %s358
      %p364 = scmp.eq.s32.totalorder %s25, 0
      %p365 = por %p363, %p364
      %p366 = scmp.ne.s32.totalorder %s355, %s358
      %p367 = scmp.eq.s32.totalorder %s30, 1
      %p368 = por %p366, %p367
      %p369 = scmp.ne.s32.totalorder %s358, %s359
      %p370 = scmp.eq.s32.totalorder %s30, 0
      %p371 = por %p369, %p370
      %p372 = scmp.ne.s32.totalorder %s358, %s359
      %p373 = scmp.eq.s32.totalorder %s31, 1
      %p374 = por %p372, %p373
      %p376 = scmp.ne.s32.totalorder %s359, %s375
      %p377 = scmp.eq.s32.totalorder %s31, 0
      %p378 = por %p376, %p377
      %p379 = scmp.le.s32.totalorder 1, %s25
      %p380 = scmp.lt.s32.totalorder %s25, 3
      %p381 = pnand %p379, %p380
      %p382 = pneg %p381
      // Predicated region
      $region9: #{pspnet_forward.1} parent=5 // pred_check
        _
      $region10: #{pspnet_forward.1} parent=5 // pred_check_branch
        %384 = sbr.rel (%p381) target = $region12
      $region11: #{pspnet_forward.1} parent=5 // pred_region
        %s385 = ssub.s32 %s25, 1
        // Predicated region
        $region13: #{pspnet_forward.1} parent=11 // pred_check
          %p386 = pneg %p72
        $region14: #{pspnet_forward.1} parent=11 // pred_check_branch
          %388 = sbr.rel (%p386) target = $region16
        $region15: #{pspnet_forward.1} parent=11 // pred_region
          _
        $region16: #{pspnet_forward.1} parent=11 // pred_fallthru
          _
        // Predicated region
        $region17: #{pspnet_forward.1} parent=11 // pred_check
          %p389 = pneg %p93
        $region18: #{pspnet_forward.1} parent=11 // pred_check_branch
          %391 = sbr.rel (%p389) target = $region20
        $region19: #{pspnet_forward.1} parent=11 // pred_region
          _
        $region20: #{pspnet_forward.1} parent=11 // pred_fallthru
          _
        // Predicated region
        $region21: #{pspnet_forward.1} parent=11 // pred_check
          %p392 = pneg %p114
        $region22: #{pspnet_forward.1} parent=11 // pred_check_branch
          %394 = sbr.rel (%p392) target = $region24
        $region23: #{pspnet_forward.1} parent=11 // pred_region
          %s396 = ssub.s32 448, 448
          %397 = vsyncadd [#allocation3], %s396
          %s398 = sshll.u32 [#allocation2], 4
          %s399 = int_to_ptr.vmem [resolvable:$true] %s398
          %404 = dma.hbm_to_vmem [thread:$0]  %s3, 448, %s399, [#allocation3], 64, 64, 4
        $region24: #{pspnet_forward.1} parent=11 // pred_fallthru
          _
        // Predicated region
        $region25: #{pspnet_forward.1} parent=11 // pred_check
          %p405 = pneg %p135
        $region26: #{pspnet_forward.1} parent=11 // pred_check_branch
          %407 = sbr.rel (%p405) target = $region28
        $region27: #{pspnet_forward.1} parent=11 // pred_region
          _
        $region28: #{pspnet_forward.1} parent=11 // pred_fallthru
          _
        // Predicated region
        $region29: #{pspnet_forward.1} parent=11 // pred_check
          %p408 = pneg %p156
        $region30: #{pspnet_forward.1} parent=11 // pred_check_branch
          %410 = sbr.rel (%p408) target = $region32
        $region31: #{pspnet_forward.1} parent=11 // pred_region
          _
        $region32: #{pspnet_forward.1} parent=11 // pred_fallthru
          _
        // Predicated region
        $region33: #{pspnet_forward.1} parent=11 // pred_check
          %p411 = pneg %p177
        $region34: #{pspnet_forward.1} parent=11 // pred_check_branch
          %413 = sbr.rel (%p411) target = $region36
        $region35: #{pspnet_forward.1} parent=11 // pred_region
          _
        $region36: #{pspnet_forward.1} parent=11 // pred_fallthru
          _
        // Predicated region
        $region37: #{pspnet_forward.1} parent=11 // pred_check
          %p414 = pneg %p198
        $region38: #{pspnet_forward.1} parent=11 // pred_check_branch
          %416 = sbr.rel (%p414) target = $region40
        $region39: #{pspnet_forward.1} parent=11 // pred_region
          %s418 = ssub.s32 4096, 4096
          %419 = vsyncadd [#allocation5], %s418
          %s420 = sshll.u32 [#allocation4], 4
          %s421 = int_to_ptr.vmem [resolvable:$true] %s420
          %426 = dma.hbm_to_vmem [thread:$0]  %s7, 4096, %s421, [#allocation5], 64, 64, 4
        $region40: #{pspnet_forward.1} parent=11 // pred_fallthru
          _
        // Predicated region
        $region41: #{pspnet_forward.1} parent=11 // pred_check
          %p427 = pneg %p219
        $region42: #{pspnet_forward.1} parent=11 // pred_check_branch
          %429 = sbr.rel (%p427) target = $region44
        $region43: #{pspnet_forward.1} parent=11 // pred_region
          %s431 = ssub.s32 512, 512
          %432 = vsyncadd [#allocation5], %s431
          %s433 = sshll.u32 [#allocation6], 4
          %s434 = int_to_ptr.vmem [resolvable:$true] %s433
          %439 = dma.hbm_to_vmem [thread:$0]  %s8, 512, %s434, [#allocation5], 64, 64, 4
        $region44: #{pspnet_forward.1} parent=11 // pred_fallthru
          _
        // Predicated region
        $region45: #{pspnet_forward.1} parent=11 // pred_check
          %p440 = pneg %p240
        $region46: #{pspnet_forward.1} parent=11 // pred_check_branch
          %442 = sbr.rel (%p440) target = $region48
        $region47: #{pspnet_forward.1} parent=11 // pred_region
          %s444 = ssub.s32 1024, 1024
          %445 = vsyncadd [#allocation8], %s444
          %s446 = sshll.u32 [#allocation7], 4
          %s447 = int_to_ptr.vmem [resolvable:$true] %s446
          %452 = dma.hbm_to_vmem [thread:$0]  %s9, 1024, %s447, [#allocation8], 64, 64, 4
        $region48: #{pspnet_forward.1} parent=11 // pred_fallthru
          _
        // Predicated region
        $region49: #{pspnet_forward.1} parent=11 // pred_check
          %p453 = pneg %p261
        $region50: #{pspnet_forward.1} parent=11 // pred_check_branch
          %455 = sbr.rel (%p453) target = $region52
        $region51: #{pspnet_forward.1} parent=11 // pred_region
          %s457 = ssub.s32 16, 16
          %458 = vsyncadd [#allocation8], %s457
          %s460 = sshll.u32 [#allocation9], 4
          %s461 = int_to_ptr.vmem [resolvable:$true] %s460
          %463 = dma.hbm_to_vmem [thread:$0]  %s10, 16, %s461, [#allocation8]
        $region52: #{pspnet_forward.1} parent=11 // pred_fallthru
          _
        // Predicated region
        $region53: #{pspnet_forward.1} parent=11 // pred_check
          %p464 = pneg %p282
        $region54: #{pspnet_forward.1} parent=11 // pred_check_branch
          %466 = sbr.rel (%p464) target = $region56
        $region55: #{pspnet_forward.1} parent=11 // pred_region
          _
        $region56: #{pspnet_forward.1} parent=11 // pred_fallthru
          _
        // Predicated region
        $region57: #{pspnet_forward.1} parent=11 // pred_check
          %p467 = pneg %p303
        $region58: #{pspnet_forward.1} parent=11 // pred_check_branch
          %469 = sbr.rel (%p467) target = $region60
        $region59: #{pspnet_forward.1} parent=11 // pred_region
          _
        $region60: #{pspnet_forward.1} parent=11 // pred_fallthru
          _
        // Predicated region
        $region61: #{pspnet_forward.1} parent=11 // pred_check
          %p470 = pneg %p324
        $region62: #{pspnet_forward.1} parent=11 // pred_check_branch
          %472 = sbr.rel (%p470) target = $region64
        $region63: #{pspnet_forward.1} parent=11 // pred_region
          %s474 = ssub.s32 1024, 1024
          %475 = vsyncadd [#allocation11], %s474
          %s476 = sshll.u32 [#allocation10], 4
          %s477 = int_to_ptr.vmem [resolvable:$true] %s476
          %482 = dma.hbm_to_vmem [thread:$0]  %s13, 1024, %s477, [#allocation11], 64, 64, 4
        $region64: #{pspnet_forward.1} parent=11 // pred_fallthru
          _
        // Predicated region
        $region65: #{pspnet_forward.1} parent=11 // pred_check
          %p483 = pneg %p345
        $region66: #{pspnet_forward.1} parent=11 // pred_check_branch
          %485 = sbr.rel (%p483) target = $region68
        $region67: #{pspnet_forward.1} parent=11 // pred_region
          _
        $region68: #{pspnet_forward.1} parent=11 // pred_fallthru
          _
      $region12: #{pspnet_forward.1} parent=5 // pred_fallthru
        _
      %p486 = scmp.lt.s32.totalorder %s25, 2
      // Predicated region
      $region69: #{pspnet_forward.1} parent=5 // pred_check
        %p487 = pneg %p486
      $region70: #{pspnet_forward.1} parent=5 // pred_check_branch
        %489 = sbr.rel (%p487) target = $region72
      $region71: #{pspnet_forward.1} parent=5 // pred_region
        // Predicated region
        $region73: #{pspnet_forward.1} parent=71 // pred_check
          %p490 = pneg %p45
        $region74: #{pspnet_forward.1} parent=71 // pred_check_branch
          %492 = sbr.rel (%p490) target = $region76
        $region75: #{pspnet_forward.1} parent=71 // pred_region
          %p493 = scmp.lt.s32.totalorder %s25, 1
          %s494 = scalar_select %p493, %s25, 1
          %s495 = smul.addr %s494, 8
          %s496 = smul.addr %s495, 4
          %s497 = scalar_lea.vmem %s0, %s496
        $region76: #{pspnet_forward.1} parent=71 // pred_fallthru
          _
      $region72: #{pspnet_forward.1} parent=5 // pred_fallthru
        _
      %p498 = scmp.le.s32.totalorder 1, %s25
      %p499 = scmp.lt.s32.totalorder %s25, 3
      %p500 = pnand %p498, %p499
      %p501 = pneg %p500
      // Predicated region
      $region77: #{pspnet_forward.1} parent=5 // pred_check
        _
      $region78: #{pspnet_forward.1} parent=5 // pred_check_branch
        %503 = sbr.rel (%p500) target = $region80
      $region79: #{pspnet_forward.1} parent=5 // pred_region
        %s504 = ssub.s32 %s25, 1
        // Predicated region
        $region81: #{pspnet_forward.1} parent=79 // pred_check
          %p505 = pneg %p114
        $region82: #{pspnet_forward.1} parent=79 // pred_check_branch
          %507 = sbr.rel (%p505) target = $region84
        $region83: #{pspnet_forward.1} parent=79 // pred_region
          %508 = dma.done [#allocation3], 448
        $region84: #{pspnet_forward.1} parent=79 // pred_fallthru
          _
        // Predicated region
        $region85: #{pspnet_forward.1} parent=79 // pred_check
          %p509 = pneg %p198
        $region86: #{pspnet_forward.1} parent=79 // pred_check_branch
          %511 = sbr.rel (%p509) target = $region88
        $region87: #{pspnet_forward.1} parent=79 // pred_region
          %512 = dma.done [#allocation5], 4096
        $region88: #{pspnet_forward.1} parent=79 // pred_fallthru
          _
        // Predicated region
        $region89: #{pspnet_forward.1} parent=79 // pred_check
          %p513 = pneg %p219
        $region90: #{pspnet_forward.1} parent=79 // pred_check_branch
          %515 = sbr.rel (%p513) target = $region92
        $region91: #{pspnet_forward.1} parent=79 // pred_region
          %516 = dma.done [#allocation5], 512
        $region92: #{pspnet_forward.1} parent=79 // pred_fallthru
          _
        // Predicated region
        $region93: #{pspnet_forward.1} parent=79 // pred_check
          %p517 = pneg %p240
        $region94: #{pspnet_forward.1} parent=79 // pred_check_branch
          %519 = sbr.rel (%p517) target = $region96
        $region95: #{pspnet_forward.1} parent=79 // pred_region
          %520 = dma.done [#allocation8], 1024
        $region96: #{pspnet_forward.1} parent=79 // pred_fallthru
          _
        // Predicated region
        $region97: #{pspnet_forward.1} parent=79 // pred_check
          %p521 = pneg %p261
        $region98: #{pspnet_forward.1} parent=79 // pred_check_branch
          %523 = sbr.rel (%p521) target = $region100
        $region99: #{pspnet_forward.1} parent=79 // pred_region
          %524 = dma.done [#allocation8], 16
        $region100: #{pspnet_forward.1} parent=79 // pred_fallthru
          _
        // Predicated region
        $region101: #{pspnet_forward.1} parent=79 // pred_check
          %p525 = pneg %p324
        $region102: #{pspnet_forward.1} parent=79 // pred_check_branch
          %527 = sbr.rel (%p525) target = $region104
        $region103: #{pspnet_forward.1} parent=79 // pred_region
          %528 = dma.done [#allocation11], 1024
        $region104: #{pspnet_forward.1} parent=79 // pred_fallthru
          _
        %p529 = scmp.lt.s32.totalorder %s30, 1
        %s530 = scalar_select %p529, %s30, 1
        %s531 = smul.addr %s530, 8
        %s532 = smul.addr %s531, 4
        %s533 = scalar_lea.vmem %s0, %s532
        %p534 = pneg %p51
        %p535 = pneg %p48
        %p536 = pneg %p72
        %p537 = pneg %p69
        %p538 = pneg %p93
        %p539 = pneg %p90
        %p540 = pneg %p114
        %p541 = pneg %p111
        %p542 = pneg %p135
        %p543 = pneg %p132
        %p544 = pneg %p156
        %p545 = pneg %p153
        %p546 = pneg %p177
        %p547 = pneg %p174
        %p548 = pneg %p198
        %p549 = pneg %p195
        %p550 = pneg %p219
        %p551 = pneg %p216
        %p552 = pneg %p240
        %p553 = pneg %p237
        %p554 = pneg %p261
        %p555 = pneg %p258
        %p556 = pneg %p282
        %p557 = pneg %p279
        %p558 = pneg %p303
        %p559 = pneg %p300
        %p560 = pneg %p324
        %p561 = pneg %p321
        %p562 = pneg %p345
        %p563 = pneg %p342
        %p564 = pneg %p371
        %p565 = pneg %p368
        %p566 = scmp.lt.s32.totalorder %s30, 1
        %s567 = scalar_select %p566, %s30, 1
        %s568 = smul.addr %s567, 16
        %s569 = smul.addr %s568, 8
        %s570 = scalar_lea.vmem %s15, %s569
        %p571 = scmp.lt.s32.totalorder %s30, 1
        %s572 = scalar_select %p571, %s30, 1
        %s573 = smul.addr %s572, 8
        %s574 = smul.addr %s573, 4
        %s575 = scalar_lea.vmem %s0, %s574
        %p576 = scmp.lt.s32.totalorder %s30, 1
        %s577 = scalar_select %p576, %s30, 1
        %s578 = smul.addr %s577, 16
        %s579 = smul.addr %s578, 8
        %s580 = scalar_lea.vmem %s15, %s579
        %v584 = vld [vmem:[%s575] sm:$0xf]
        %v585 = vld [vmem:[%s575 + $0x4] sm:$0xf]
        %v586 = vld [vmem:[%s575 + $0x8] sm:$0xf]
        %v587 = vld [vmem:[%s575 + $0xc] sm:$0xf]
        %v588 = vld [vmem:[%s575 + $0x10] sm:$0xf]
        %v589 = vld [vmem:[%s575 + $0x14] sm:$0xf]
        %v590 = vld [vmem:[%s575 + $0x18] sm:$0xf]
        %v591 = vld [vmem:[%s575 + $0x1c] sm:$0xf]
        %v592 = vld [vmem:[%s1] sm:$0x3]
        %v593 = vld [vmem:[%s2] sm:$0x1]
        %v595 = vlaneseq
        %v596 = vshrl.u32 %v595, 7
        %v597 = vsub.s32 0, %v596
        %v598 = vrot.slane %v593, %v597
        %v608 = vunpack.c.l.b16 %v584
        %v609 = vunpack.c.l.b16 %v585
        %v610 = vunpack.c.l.b16 %v586
        %v611 = vunpack.c.l.b16 %v587
        %v612 = vunpack.c.l.b16 %v588
        %v613 = vunpack.c.l.b16 %v589
        %v614 = vunpack.c.l.b16 %v590
        %v615 = vunpack.c.l.b16 %v591
        %v616 = vpack.c.b16 %v609, %v608
        %v617 = vpack.c.b16 %v611, %v610
        %v618 = vpack.c.b16 %v613, %v612
        %v619 = vpack.c.b16 %v615, %v614
        %vm620 = vcmask 31744
        %v622 = vsel %vm620, %v616, 0
        %v625 = vsel %vm620, %v617, 0
        %v628 = vsel %vm620, %v618, 0
        %v631 = vsel %vm620, %v619, 0
        %vm633 = vcmask 1041408
        %v635 = vsel %vm633, %v592, 0
        %637 = vmatprep.subr.bf16.mxu0 0
        %638 = vmatpush1.bf16.msra.mxu0 0
        %639 = vmatprep.subr.bf16.mxu0 0
        %640 = vmatpush1.bf16.msra.mxu0 0
        %641 = vmatprep.subr.bf16.mxu0 0
        %642 = vmatpush1.bf16.msra.mxu0 0
        %643 = vmatprep.subr.bf16.mxu0 0
        %644 = vmatpush1.bf16.msra.mxu0 0
        %645 = vmatprep.subr.bf16.mxu0 0
        %646 = vmatpush1.bf16.msra.mxu0 0
        %647 = vmatprep.subr.bf16.mxu0 0
        %648 = vmatpush1.bf16.msra.mxu0 0
        %649 = vmatprep.subr.bf16.mxu0 0
        %650 = vmatpush1.bf16.msra.mxu0 0
        %651 = vmatprep.subr.bf16.mxu0 0
        %652 = vmatpush1.bf16.msra.mxu0 %v635
        %653 = vmatprep.subr.bf16.mxu0 0
        %654 = vmatpush2.bf16.msra.mxu0 0
        %655 = vmatprep.subr.bf16.mxu0 0
        %656 = vmatpush2.bf16.msra.mxu0 0
        %657 = vmatprep.subr.bf16.mxu0 0
        %658 = vmatpush2.bf16.msra.mxu0 0
        %659 = vmatprep.subr.bf16.mxu0 0
        %660 = vmatpush2.bf16.msra.mxu0 0
        %661 = vmatprep.subr.bf16.mxu0 0
        %662 = vmatpush2.bf16.msra.mxu0 0
        %663 = vmatprep.subr.bf16.mxu0 0
        %664 = vmatpush2.bf16.msra.mxu0 0
        %665 = vmatprep.subr.bf16.mxu0 0
        %666 = vmatpush2.bf16.msra.mxu0 0
        %667 = vmatprep.subr.bf16.mxu0 0
        %668 = vmatpush2.bf16.msra.mxu0 0
        %669 = vmatprep.mubr.bf16.mxu0 0
        %670 = vmatmul.mubr.bf16.gmra.mxu0 %v622
        %v671 = vpop.f32.mrf.mxu0
        %v672 = vadd.f32 %v598, %v671
        %v673 = vpop.f32.mrf.mxu0
        %v674 = vpop.f32.mrf.mxu0
        %v675 = vadd.f32 %v598, %v674
        %v676 = vpop.f32.mrf.mxu0
        %677 = vmatprep.mubr.bf16.mxu0 0
        %678 = vmatmul.mubr.bf16.gmra.mxu0 %v625
        %v679 = vpop.f32.mrf.mxu0
        %v680 = vadd.f32 %v598, %v679
        %v681 = vpop.f32.mrf.mxu0
        %v682 = vpop.f32.mrf.mxu0
        %v683 = vadd.f32 %v598, %v682
        %v684 = vpop.f32.mrf.mxu0
        %685 = vmatprep.mubr.bf16.mxu0 0
        %686 = vmatmul.mubr.bf16.gmra.mxu0 %v628
        %v687 = vpop.f32.mrf.mxu0
        %v688 = vadd.f32 %v598, %v687
        %v689 = vpop.f32.mrf.mxu0
        %v690 = vpop.f32.mrf.mxu0
        %v691 = vadd.f32 %v598, %v690
        %v692 = vpop.f32.mrf.mxu0
        %693 = vmatprep.mubr.bf16.mxu0 0
        %694 = vmatmul.mubr.bf16.gmra.mxu0 %v631
        %v695 = vpop.f32.mrf.mxu0
        %v696 = vadd.f32 %v598, %v695
        %v697 = vpop.f32.mrf.mxu0
        %v698 = vpop.f32.mrf.mxu0
        %v699 = vadd.f32 %v598, %v698
        %v700 = vpop.f32.mrf.mxu0
        %701 = vdwg.mxu0
        %v702 = vmax.f32 %v672, 0.0
        %v703 = vmax.f32 %v675, 0.0
        %v704 = vmax.f32 %v680, 0.0
        %v705 = vmax.f32 %v683, 0.0
        %v706 = vmax.f32 %v688, 0.0
        %v707 = vmax.f32 %v691, 0.0
        %v708 = vmax.f32 %v696, 0.0
        %v709 = vmax.f32 %v699, 0.0
        %v710 = vpack.c.bf16 %v703, %v702
        %v711 = vpack.c.bf16 %v705, %v704
        %v712 = vpack.c.bf16 %v707, %v706
        %v713 = vpack.c.bf16 %v709, %v708
        %v714 = vld [vmem:[#allocation2] sm:$0xf]
        %v715 = vld [vmem:[#allocation2 + $0x4] sm:$0xf]
        %v716 = vld [vmem:[#allocation2 + $0x8] sm:$0xf]
        %v717 = vld [vmem:[#allocation2 + $0xc] sm:$0xf]
        %v718 = vld [vmem:[#allocation2 + $0x10] sm:$0xf]
        %v719 = vld [vmem:[#allocation2 + $0x14] sm:$0xf]
        %v720 = vld [vmem:[#allocation2 + $0x18] sm:$0xf]
        %v728 = vunpack.c.l.b16 %v714
        %v729 = vunpack.c.l.b16 %v715
        %v730 = vunpack.c.l.b16 %v716
        %v731 = vunpack.c.l.b16 %v717
        %v732 = vunpack.c.l.b16 %v718
        %v733 = vunpack.c.l.b16 %v719
        %v734 = vunpack.c.l.b16 %v720
        %v735 = vpack.c.b16 %v729, %v728
        %v736 = vpack.c.b16 %v731, %v730
        %v737 = vpack.c.b16 %v733, %v732
        %v738 = vpack.c.b16 %v734, %v734
        %vm739 = vcmask 523264
        %v741 = vsel %vm739, %v735, 0
        %v744 = vsel %vm739, %v736, 0
        %v747 = vsel %vm739, %v737, 0
        %v750 = vsel %vm739, %v738, 0
        %752 = vmatprep.subr.bf16.mxu0 0
        %753 = vmatpush1.bf16.msra.mxu0 0
        %754 = vmatprep.subr.bf16.mxu0 0
        %755 = vmatpush1.bf16.msra.mxu0 0
        %756 = vmatprep.subr.bf16.mxu0 0
        %757 = vmatpush1.bf16.msra.mxu0 0
        %758 = vmatprep.subr.bf16.mxu0 0
        %759 = vmatpush1.bf16.msra.mxu0 0
        %760 = vmatprep.subr.bf16.mxu0 0
        %761 = vmatpush1.bf16.msra.mxu0 %v713
        %762 = vmatprep.subr.bf16.mxu0 0
        %763 = vmatpush1.bf16.msra.mxu0 %v712
        %764 = vmatprep.subr.bf16.mxu0 0
        %765 = vmatpush1.bf16.msra.mxu0 %v711
        %766 = vmatprep.subr.bf16.mxu0 0
        %767 = vmatpush1.bf16.msra.mxu0 %v710
        %768 = vmatprep.subr.bf16.mxu0 0
        %769 = vmatpush2.bf16.msra.mxu0 0
        %770 = vmatprep.subr.bf16.mxu0 0
        %771 = vmatpush2.bf16.msra.mxu0 0
        %772 = vmatprep.subr.bf16.mxu0 0
        %773 = vmatpush2.bf16.msra.mxu0 0
        %774 = vmatprep.subr.bf16.mxu0 0
        %775 = vmatpush2.bf16.msra.mxu0 0
        %776 = vmatprep.subr.bf16.mxu0 0
        %777 = vmatpush2.bf16.msra.mxu0 0
        %778 = vmatprep.subr.bf16.mxu0 0
        %779 = vmatpush2.bf16.msra.mxu0 0
        %780 = vmatprep.subr.bf16.mxu0 0
        %781 = vmatpush2.bf16.msra.mxu0 0
        %782 = vmatprep.subr.bf16.mxu0 0
        %783 = vmatpush2.bf16.msra.mxu0 0
        %784 = vmatprep.mubr.bf16.mxu0 0
        %785 = vmatmul.mubr.bf16.gmra.mxu0 %v741
        %v786 = vpop.f32.mrf.mxu0
        %v787 = vadd.f32 0.0, %v786
        %v788 = vpop.f32.mrf.mxu0
        %v789 = vpop.f32.mrf.mxu0
        %v790 = vadd.f32 0.0, %v789
        %v791 = vpop.f32.mrf.mxu0
        %792 = vmatprep.mubr.bf16.mxu0 0
        %793 = vmatmul.mubr.bf16.gmra.mxu0 %v744
        %v794 = vpop.f32.mrf.mxu0
        %v795 = vadd.f32 0.0, %v794
        %v796 = vpop.f32.mrf.mxu0
        %v797 = vpop.f32.mrf.mxu0
        %v798 = vadd.f32 0.0, %v797
        %v799 = vpop.f32.mrf.mxu0
        %800 = vmatprep.mubr.bf16.mxu0 0
        %801 = vmatmul.mubr.bf16.gmra.mxu0 %v747
        %v802 = vpop.f32.mrf.mxu0
        %v803 = vadd.f32 0.0, %v802
        %v804 = vpop.f32.mrf.mxu0
        %v805 = vpop.f32.mrf.mxu0
        %v806 = vadd.f32 0.0, %v805
        %v807 = vpop.f32.mrf.mxu0
        %808 = vmatprep.mubr.bf16.mxu0 0
        %809 = vmatmul.mubr.bf16.gmra.mxu0 %v750
        %v810 = vpop.f32.mrf.mxu0
        %v811 = vadd.f32 0.0, %v810
        %v812 = vpop.f32.mrf.mxu0
        %v813 = vpop.f32.mrf.mxu0
        %v814 = vpop.f32.mrf.mxu0
        %815 = vdwg.mxu0
        %v816 = vpack.c.bf16 %v790, %v787
        %v817 = vpack.c.bf16 %v798, %v795
        %v818 = vpack.c.bf16 %v806, %v803
        %v819 = vpack.c.bf16 %v811, %v811
        %v820 = vld [vmem:[%s4] sm:$0xff]
        %v821 = vld [vmem:[%s4 + $0x8] sm:$0xff]
        %v822 = vld [vmem:[%s4 + $0x10] sm:$0xff]
        %v823 = vld [vmem:[%s4 + $0x18] sm:$0xff]
        %v824 = vld [vmem:[%s4 + $0x20] sm:$0xff]
        %v825 = vld [vmem:[%s4 + $0x28] sm:$0xff]
        %v826 = vld [vmem:[%s4 + $0x30] sm:$0xff]
        %v827 = vld [vmem:[%s4 + $0x38] sm:$0xff]
        %v828 = vld [vmem:[%s4 + $0x40] sm:$0xff]
        %v829 = vld [vmem:[%s4 + $0x48] sm:$0xff]
        %v830 = vld [vmem:[%s4 + $0x50] sm:$0xff]
        %v831 = vld [vmem:[%s4 + $0x58] sm:$0xff]
        %v832 = vld [vmem:[%s4 + $0x60] sm:$0xff]
        %v833 = vld [vmem:[%s4 + $0x68] sm:$0xff]
        %v834 = vld [vmem:[%s4 + $0x70] sm:$0xff]
        %v835 = vld [vmem:[%s4 + $0x78] sm:$0xff]
        %v836 = vld [vmem:[%s4 + $0x80] sm:$0xff]
        %v837 = vld [vmem:[%s4 + $0x88] sm:$0xff]
        %v838 = vld [vmem:[%s4 + $0x90] sm:$0xff]
        %v839 = vld [vmem:[%s4 + $0x98] sm:$0xff]
        %v840 = vld [vmem:[%s4 + $0xa0] sm:$0xff]
        %v841 = vld [vmem:[%s4 + $0xa8] sm:$0xff]
        %v842 = vld [vmem:[%s4 + $0xb0] sm:$0xff]
        %v843 = vld [vmem:[%s4 + $0xb8] sm:$0xff]
        %v844 = vld [vmem:[%s4 + $0xc0] sm:$0xff]
        %v845 = vld [vmem:[%s4 + $0xc8] sm:$0xff]
        %v846 = vld [vmem:[%s4 + $0xd0] sm:$0xff]
        %v847 = vld [vmem:[%s4 + $0xd8] sm:$0xff]
        %v848 = vld [vmem:[%s4 + $0xe0] sm:$0xff]
        %v849 = vld [vmem:[%s4 + $0xe8] sm:$0xff]
        %v850 = vld [vmem:[%s4 + $0xf0] sm:$0xff]
        %v851 = vld [vmem:[%s4 + $0xf8] sm:$0xff]
        %v852 = vld [vmem:[%s6] sm:$0xff]
        %v853 = vld [vmem:[%s6 + $0x8] sm:$0xff]
        %v854 = vld [vmem:[%s6 + $0x10] sm:$0xff]
        %v855 = vld [vmem:[%s6 + $0x18] sm:$0xff]
        %v856 = vld [vmem:[%s6 + $0x20] sm:$0xff]
        %v857 = vld [vmem:[%s6 + $0x28] sm:$0xff]
        %v858 = vld [vmem:[%s6 + $0x30] sm:$0xff]
        %v859 = vld [vmem:[%s6 + $0x38] sm:$0xff]
        %v860 = vld [vmem:[%s6 + $0x40] sm:$0xff]
        %v861 = vld [vmem:[%s6 + $0x48] sm:$0xff]
        %v862 = vld [vmem:[%s6 + $0x50] sm:$0xff]
        %v863 = vld [vmem:[%s6 + $0x58] sm:$0xff]
        %v864 = vld [vmem:[%s6 + $0x60] sm:$0xff]
        %v865 = vld [vmem:[%s6 + $0x68] sm:$0xff]
        %vm866 = vcmp.gt.bf16.partialorder %v852, 0
        %vm867 = vcmp.gt.bf16.partialorder %v853, 0
        %vm868 = vcmp.gt.bf16.partialorder %v854, 0
        %vm869 = vcmp.gt.bf16.partialorder %v855, 0
        %vm870 = vcmp.gt.bf16.partialorder %v856, 0
        %vm871 = vcmp.gt.bf16.partialorder %v857, 0
        %vm872 = vcmp.gt.bf16.partialorder %v858, 0
        %vm873 = vcmp.gt.bf16.partialorder %v859, 0
        %vm874 = vcmp.gt.bf16.partialorder %v860, 0
        %vm875 = vcmp.gt.bf16.partialorder %v861, 0
        %vm876 = vcmp.gt.bf16.partialorder %v862, 0
        %vm877 = vcmp.gt.bf16.partialorder %v863, 0
        %vm878 = vcmp.gt.bf16.partialorder %v864, 0
        %vm879 = vcmp.gt.bf16.partialorder %v865, 0
        %v880 = vld [vmem:[%s5] sm:$0xf]
        %v882 = vlaneseq
        %v883 = vshrl.u32 %v882, 7
        %v884 = vsub.s32 0, %v883
        %v885 = vrot.slane %v880, %v884
        %v886 = vlaneseq
        %v887 = vshrl.u32 %v886, 7
        %v888 = vsub.s32 1, %v887
        %v889 = vrot.slane %v880, %v888
        %v890 = vlaneseq
        %v891 = vshrl.u32 %v890, 7
        %v892 = vsub.s32 2, %v891
        %v893 = vrot.slane %v880, %v892
        %v894 = vlaneseq
        %v895 = vshrl.u32 %v894, 7
        %v896 = vsub.s32 3, %v895
        %v897 = vrot.slane %v880, %v896
        %v934 = vunpack.c.l.b16 %v820
        %v935 = vunpack.c.h.b16 %v820
        %v936 = vunpack.c.l.b16 %v821
        %v937 = vunpack.c.h.b16 %v821
        %v938 = vunpack.c.l.b16 %v822
        %v939 = vunpack.c.h.b16 %v822
        %v940 = vunpack.c.l.b16 %v823
        %v941 = vunpack.c.h.b16 %v823
        %v942 = vunpack.c.l.b16 %v824
        %v943 = vunpack.c.h.b16 %v824
        %v944 = vunpack.c.l.b16 %v825
        %v945 = vunpack.c.h.b16 %v825
        %v946 = vunpack.c.l.b16 %v826
        %v947 = vunpack.c.h.b16 %v826
        %v948 = vunpack.c.l.b16 %v827
        %v949 = vunpack.c.h.b16 %v827
        %v950 = vunpack.c.l.b16 %v828
        %v951 = vunpack.c.h.b16 %v828
        %v952 = vunpack.c.l.b16 %v829
        %v953 = vunpack.c.h.b16 %v829
        %v954 = vunpack.c.l.b16 %v830
        %v955 = vunpack.c.h.b16 %v830
        %v956 = vunpack.c.l.b16 %v831
        %v957 = vunpack.c.h.b16 %v831
        %v958 = vunpack.c.l.b16 %v832
        %v959 = vunpack.c.h.b16 %v832
        %v960 = vunpack.c.l.b16 %v833
        %v961 = vunpack.c.h.b16 %v833
        %v962 = vunpack.c.l.b16 %v834
        %v963 = vunpack.c.h.b16 %v834
        %v964 = vunpack.c.l.b16 %v835
        %v965 = vunpack.c.h.b16 %v835
        %v966 = vunpack.c.l.b16 %v836
        %v967 = vunpack.c.h.b16 %v836
        %v968 = vunpack.c.l.b16 %v837
        %v969 = vunpack.c.h.b16 %v837
        %v970 = vunpack.c.l.b16 %v838
        %v971 = vunpack.c.h.b16 %v838
        %v972 = vunpack.c.l.b16 %v839
        %v973 = vunpack.c.h.b16 %v839
        %v974 = vunpack.c.l.b16 %v840
        %v975 = vunpack.c.h.b16 %v840
        %v976 = vunpack.c.l.b16 %v841
        %v977 = vunpack.c.h.b16 %v841
        %v978 = vunpack.c.l.b16 %v842
        %v979 = vunpack.c.h.b16 %v842
        %v980 = vunpack.c.l.b16 %v843
        %v981 = vunpack.c.h.b16 %v843
        %v982 = vunpack.c.l.b16 %v844
        %v983 = vunpack.c.h.b16 %v844
        %v984 = vunpack.c.l.b16 %v845
        %v985 = vunpack.c.h.b16 %v845
        %v986 = vunpack.c.l.b16 %v846
        %v987 = vunpack.c.h.b16 %v846
        %v988 = vunpack.c.l.b16 %v847
        %v989 = vunpack.c.h.b16 %v847
        %v990 = vunpack.c.l.b16 %v848
        %v991 = vunpack.c.h.b16 %v848
        %v992 = vunpack.c.l.b16 %v849
        %v993 = vunpack.c.h.b16 %v849
        %v994 = vunpack.c.l.b16 %v850
        %v995 = vunpack.c.h.b16 %v850
        %v996 = vunpack.c.l.b16 %v851
        %v997 = vunpack.c.h.b16 %v851
        %v998 = vpack.c.b16 %v938, %v934
        %v999 = vpack.c.b16 %v939, %v935
        %v1000 = vpack.c.b16 %v940, %v936
        %v1001 = vpack.c.b16 %v941, %v937
        %v1002 = vpack.c.b16 %v946, %v942
        %v1003 = vpack.c.b16 %v947, %v943
        %v1004 = vpack.c.b16 %v948, %v944
        %v1005 = vpack.c.b16 %v949, %v945
        %v1006 = vpack.c.b16 %v954, %v950
        %v1007 = vpack.c.b16 %v955, %v951
        %v1008 = vpack.c.b16 %v956, %v952
        %v1009 = vpack.c.b16 %v957, %v953
        %v1010 = vpack.c.b16 %v962, %v958
        %v1011 = vpack.c.b16 %v963, %v959
        %v1012 = vpack.c.b16 %v964, %v960
        %v1013 = vpack.c.b16 %v965, %v961
        %v1014 = vpack.c.b16 %v970, %v966
        %v1015 = vpack.c.b16 %v971, %v967
        %v1016 = vpack.c.b16 %v972, %v968
        %v1017 = vpack.c.b16 %v973, %v969
        %v1018 = vpack.c.b16 %v978, %v974
        %v1019 = vpack.c.b16 %v979, %v975
        %v1020 = vpack.c.b16 %v980, %v976
        %v1021 = vpack.c.b16 %v981, %v977
        %v1022 = vpack.c.b16 %v986, %v982
        %v1023 = vpack.c.b16 %v987, %v983
        %v1024 = vpack.c.b16 %v988, %v984
        %v1025 = vpack.c.b16 %v989, %v985
        %v1026 = vpack.c.b16 %v994, %v990
        %v1027 = vpack.c.b16 %v995, %v991
        %v1028 = vpack.c.b16 %v996, %v992
        %v1029 = vpack.c.b16 %v997, %v993
        %1062 = vmatprep.subr.bf16.mxu0 %v1027
        %1063 = vmatpush1.bf16.msra.mxu0 %v1026
        %1064 = vmatprep.subr.bf16.mxu0 %v1023
        %1065 = vmatpush1.bf16.msra.mxu0 %v1022
        %1066 = vmatprep.subr.bf16.mxu0 %v1019
        %1067 = vmatpush1.bf16.msra.mxu0 %v1018
        %1068 = vmatprep.subr.bf16.mxu0 %v1015
        %1069 = vmatpush1.bf16.msra.mxu0 %v1014
        %1070 = vmatprep.subr.bf16.mxu0 %v1011
        %1071 = vmatpush1.bf16.msra.mxu0 %v1010
        %1072 = vmatprep.subr.bf16.mxu0 %v1007
        %1073 = vmatpush1.bf16.msra.mxu0 %v1006
        %1074 = vmatprep.subr.bf16.mxu0 %v1003
        %1075 = vmatpush1.bf16.msra.mxu0 %v1002
        %1076 = vmatprep.subr.bf16.mxu0 %v999
        %1077 = vmatpush1.bf16.msra.mxu0 %v998
        %1078 = vmatprep.subr.bf16.mxu0 0
        %1079 = vmatpush2.bf16.msra.mxu0 0
        %1080 = vmatprep.subr.bf16.mxu0 0
        %1081 = vmatpush2.bf16.msra.mxu0 0
        %1082 = vmatprep.subr.bf16.mxu0 0
        %1083 = vmatpush2.bf16.msra.mxu0 0
        %1084 = vmatprep.subr.bf16.mxu0 0
        %1085 = vmatpush2.bf16.msra.mxu0 0
        %1086 = vmatprep.subr.bf16.mxu0 0
        %1087 = vmatpush2.bf16.msra.mxu0 0
        %1088 = vmatprep.subr.bf16.mxu0 0
        %1089 = vmatpush2.bf16.msra.mxu0 0
        %1090 = vmatprep.subr.bf16.mxu0 0
        %1091 = vmatpush2.bf16.msra.mxu0 0
        %1092 = vmatprep.subr.bf16.mxu0 0
        %1093 = vmatpush2.bf16.msra.mxu0 0
        %1094 = vmatprep.mubr.bf16.mxu0 0
        %1095 = vmatmul.mubr.bf16.gmra.mxu0 %v816
        %v1096 = vpop.f32.mrf.mxu0
        %v1097 = vadd.f32 %v885, %v1096
        %v1098 = vpop.f32.mrf.mxu0
        %v1099 = vadd.f32 %v889, %v1098
        %v1100 = vpop.f32.mrf.mxu0
        %v1101 = vadd.f32 %v885, %v1100
        %v1102 = vpop.f32.mrf.mxu0
        %v1103 = vadd.f32 %v889, %v1102
        %1104 = vmatprep.mubr.bf16.mxu0 0
        %1105 = vmatmul.mubr.bf16.gmra.mxu0 %v817
        %v1106 = vpop.f32.mrf.mxu0
        %v1107 = vadd.f32 %v885, %v1106
        %v1108 = vpop.f32.mrf.mxu0
        %v1109 = vadd.f32 %v889, %v1108
        %v1110 = vpop.f32.mrf.mxu0
        %v1111 = vadd.f32 %v885, %v1110
        %v1112 = vpop.f32.mrf.mxu0
        %v1113 = vadd.f32 %v889, %v1112
        %1114 = vmatprep.mubr.bf16.mxu0 0
        %1115 = vmatmul.mubr.bf16.gmra.mxu0 %v818
        %v1116 = vpop.f32.mrf.mxu0
        %v1117 = vadd.f32 %v885, %v1116
        %v1118 = vpop.f32.mrf.mxu0
        %v1119 = vadd.f32 %v889, %v1118
        %v1120 = vpop.f32.mrf.mxu0
        %v1121 = vadd.f32 %v885, %v1120
        %v1122 = vpop.f32.mrf.mxu0
        %v1123 = vadd.f32 %v889, %v1122
        %1124 = vmatprep.mubr.bf16.mxu0 0
        %1125 = vmatmul.mubr.bf16.gmra.mxu0 %v819
        %v1126 = vpop.f32.mrf.mxu0
        %v1127 = vadd.f32 %v885, %v1126
        %v1128 = vpop.f32.mrf.mxu0
        %v1129 = vadd.f32 %v889, %v1128
        %v1130 = vpop.f32.mrf.mxu0
        %v1131 = vpop.f32.mrf.mxu0
        %1132 = vdwg.mxu0
        %1133 = vmatprep.subr.bf16.mxu0 %v1029
        %1134 = vmatpush1.bf16.msra.mxu0 %v1028
        %1135 = vmatprep.subr.bf16.mxu0 %v1025
        %1136 = vmatpush1.bf16.msra.mxu0 %v1024
        %1137 = vmatprep.subr.bf16.mxu0 %v1021
        %1138 = vmatpush1.bf16.msra.mxu0 %v1020
        %1139 = vmatprep.subr.bf16.mxu0 %v1017
        %1140 = vmatpush1.bf16.msra.mxu0 %v1016
        %1141 = vmatprep.subr.bf16.mxu0 %v1013
        %1142 = vmatpush1.bf16.msra.mxu0 %v1012
        %1143 = vmatprep.subr.bf16.mxu0 %v1009
        %1144 = vmatpush1.bf16.msra.mxu0 %v1008
        %1145 = vmatprep.subr.bf16.mxu0 %v1005
        %1146 = vmatpush1.bf16.msra.mxu0 %v1004
        %1147 = vmatprep.subr.bf16.mxu0 %v1001
        %1148 = vmatpush1.bf16.msra.mxu0 %v1000
        %1149 = vmatprep.subr.bf16.mxu0 0
        %1150 = vmatpush2.bf16.msra.mxu0 0
        %1151 = vmatprep.subr.bf16.mxu0 0
        %1152 = vmatpush2.bf16.msra.mxu0 0
        %1153 = vmatprep.subr.bf16.mxu0 0
        %1154 = vmatpush2.bf16.msra.mxu0 0
        %1155 = vmatprep.subr.bf16.mxu0 0
        %1156 = vmatpush2.bf16.msra.mxu0 0
        %1157 = vmatprep.subr.bf16.mxu0 0
        %1158 = vmatpush2.bf16.msra.mxu0 0
        %1159 = vmatprep.subr.bf16.mxu0 0
        %1160 = vmatpush2.bf16.msra.mxu0 0
        %1161 = vmatprep.subr.bf16.mxu0 0
        %1162 = vmatpush2.bf16.msra.mxu0 0
        %1163 = vmatprep.subr.bf16.mxu0 0
        %1164 = vmatpush2.bf16.msra.mxu0 0
        %1165 = vmatprep.mubr.bf16.mxu0 0
        %1166 = vmatmul.mubr.bf16.gmra.mxu0 %v816
        %v1167 = vpop.f32.mrf.mxu0
        %v1168 = vadd.f32 %v893, %v1167
        %v1169 = vpop.f32.mrf.mxu0
        %v1170 = vadd.f32 %v897, %v1169
        %v1171 = vpop.f32.mrf.mxu0
        %v1172 = vadd.f32 %v893, %v1171
        %v1173 = vpop.f32.mrf.mxu0
        %v1174 = vadd.f32 %v897, %v1173
        %1175 = vmatprep.mubr.bf16.mxu0 0
        %1176 = vmatmul.mubr.bf16.gmra.mxu0 %v817
        %v1177 = vpop.f32.mrf.mxu0
        %v1178 = vadd.f32 %v893, %v1177
        %v1179 = vpop.f32.mrf.mxu0
        %v1180 = vadd.f32 %v897, %v1179
        %v1181 = vpop.f32.mrf.mxu0
        %v1182 = vadd.f32 %v893, %v1181
        %v1183 = vpop.f32.mrf.mxu0
        %v1184 = vadd.f32 %v897, %v1183
        %1185 = vmatprep.mubr.bf16.mxu0 0
        %1186 = vmatmul.mubr.bf16.gmra.mxu0 %v818
        %v1187 = vpop.f32.mrf.mxu0
        %v1188 = vadd.f32 %v893, %v1187
        %v1189 = vpop.f32.mrf.mxu0
        %v1190 = vadd.f32 %v897, %v1189
        %v1191 = vpop.f32.mrf.mxu0
        %v1192 = vadd.f32 %v893, %v1191
        %v1193 = vpop.f32.mrf.mxu0
        %v1194 = vadd.f32 %v897, %v1193
        %1195 = vmatprep.mubr.bf16.mxu0 0
        %1196 = vmatmul.mubr.bf16.gmra.mxu0 %v819
        %v1197 = vpop.f32.mrf.mxu0
        %v1198 = vadd.f32 %v893, %v1197
        %v1199 = vpop.f32.mrf.mxu0
        %v1200 = vadd.f32 %v897, %v1199
        %v1201 = vpop.f32.mrf.mxu0
        %v1202 = vpop.f32.mrf.mxu0
        %1203 = vdwg.mxu0
        %v1204 = vmax.f32 %v1097, 0.0
        %v1205 = vmax.f32 %v1099, 0.0
        %v1206 = vmax.f32 %v1168, 0.0
        %v1207 = vmax.f32 %v1170, 0.0
        %v1208 = vmax.f32 %v1101, 0.0
        %v1209 = vmax.f32 %v1103, 0.0
        %v1210 = vmax.f32 %v1172, 0.0
        %v1211 = vmax.f32 %v1174, 0.0
        %v1212 = vmax.f32 %v1107, 0.0
        %v1213 = vmax.f32 %v1109, 0.0
        %v1214 = vmax.f32 %v1178, 0.0
        %v1215 = vmax.f32 %v1180, 0.0
        %v1216 = vmax.f32 %v1111, 0.0
        %v1217 = vmax.f32 %v1113, 0.0
        %v1218 = vmax.f32 %v1182, 0.0
        %v1219 = vmax.f32 %v1184, 0.0
        %v1220 = vmax.f32 %v1117, 0.0
        %v1221 = vmax.f32 %v1119, 0.0
        %v1222 = vmax.f32 %v1188, 0.0
        %v1223 = vmax.f32 %v1190, 0.0
        %v1224 = vmax.f32 %v1121, 0.0
        %v1225 = vmax.f32 %v1123, 0.0
        %v1226 = vmax.f32 %v1192, 0.0
        %v1227 = vmax.f32 %v1194, 0.0
        %v1228 = vmax.f32 %v1127, 0.0
        %v1229 = vmax.f32 %v1129, 0.0
        %v1230 = vmax.f32 %v1198, 0.0
        %v1231 = vmax.f32 %v1200, 0.0
        %v1232 = vsel %vm866, 65537, 0
        %v1233 = vsel %vm867, 65537, 0
        %v1234 = vsel %vm868, 65537, 0
        %v1235 = vsel %vm869, 65537, 0
        %v1236 = vsel %vm870, 65537, 0
        %v1237 = vsel %vm871, 65537, 0
        %v1238 = vsel %vm872, 65537, 0
        %v1239 = vsel %vm873, 65537, 0
        %v1240 = vsel %vm874, 65537, 0
        %v1241 = vsel %vm875, 65537, 0
        %v1242 = vsel %vm876, 65537, 0
        %v1243 = vsel %vm877, 65537, 0
        %v1244 = vsel %vm878, 65537, 0
        %v1245 = vsel %vm879, 65537, 0
        %v1246 = vunpack.c.l.b16 %v1232
        %v1247 = vunpack.c.h.b16 %v1232
        %v1248 = vunpack.c.l.b16 %v1233
        %v1249 = vunpack.c.h.b16 %v1233
        %v1250 = vunpack.c.l.b16 %v1234
        %v1251 = vunpack.c.h.b16 %v1234
        %v1252 = vunpack.c.l.b16 %v1235
        %v1253 = vunpack.c.h.b16 %v1235
        %v1254 = vunpack.c.l.b16 %v1236
        %v1255 = vunpack.c.h.b16 %v1236
        %v1256 = vunpack.c.l.b16 %v1237
        %v1257 = vunpack.c.h.b16 %v1237
        %v1258 = vunpack.c.l.b16 %v1238
        %v1259 = vunpack.c.h.b16 %v1238
        %v1260 = vunpack.c.l.b16 %v1239
        %v1261 = vunpack.c.h.b16 %v1239
        %v1262 = vunpack.c.l.b16 %v1240
        %v1263 = vunpack.c.h.b16 %v1240
        %v1264 = vunpack.c.l.b16 %v1241
        %v1265 = vunpack.c.h.b16 %v1241
        %v1266 = vunpack.c.l.b16 %v1242
        %v1267 = vunpack.c.h.b16 %v1242
        %v1268 = vunpack.c.l.b16 %v1243
        %v1269 = vunpack.c.h.b16 %v1243
        %v1270 = vunpack.c.l.b16 %v1244
        %v1271 = vunpack.c.h.b16 %v1244
        %v1272 = vunpack.c.l.b16 %v1245
        %v1273 = vunpack.c.h.b16 %v1245
        %vm1274 = vcmp.ne.s32.totalorder %v1246, 0
        %vm1275 = vcmp.ne.s32.totalorder %v1247, 0
        %vm1276 = vcmp.ne.s32.totalorder %v1248, 0
        %vm1277 = vcmp.ne.s32.totalorder %v1249, 0
        %vm1278 = vcmp.ne.s32.totalorder %v1250, 0
        %vm1279 = vcmp.ne.s32.totalorder %v1251, 0
        %vm1280 = vcmp.ne.s32.totalorder %v1252, 0
        %vm1281 = vcmp.ne.s32.totalorder %v1253, 0
        %vm1282 = vcmp.ne.s32.totalorder %v1254, 0
        %vm1283 = vcmp.ne.s32.totalorder %v1255, 0
        %vm1284 = vcmp.ne.s32.totalorder %v1256, 0
        %vm1285 = vcmp.ne.s32.totalorder %v1257, 0
        %vm1286 = vcmp.ne.s32.totalorder %v1258, 0
        %vm1287 = vcmp.ne.s32.totalorder %v1259, 0
        %vm1288 = vcmp.ne.s32.totalorder %v1260, 0
        %vm1289 = vcmp.ne.s32.totalorder %v1261, 0
        %vm1290 = vcmp.ne.s32.totalorder %v1262, 0
        %vm1291 = vcmp.ne.s32.totalorder %v1263, 0
        %vm1292 = vcmp.ne.s32.totalorder %v1264, 0
        %vm1293 = vcmp.ne.s32.totalorder %v1265, 0
        %vm1294 = vcmp.ne.s32.totalorder %v1266, 0
        %vm1295 = vcmp.ne.s32.totalorder %v1267, 0
        %vm1296 = vcmp.ne.s32.totalorder %v1268, 0
        %vm1297 = vcmp.ne.s32.totalorder %v1269, 0
        %vm1298 = vcmp.ne.s32.totalorder %v1270, 0
        %vm1299 = vcmp.ne.s32.totalorder %v1271, 0
        %vm1300 = vcmp.ne.s32.totalorder %v1272, 0
        %vm1301 = vcmp.ne.s32.totalorder %v1273, 0
        %v1302 = vsel %vm1274, %v1204, 0.0
        %v1303 = vsel %vm1275, %v1205, 0.0
        %v1304 = vsel %vm1276, %v1206, 0.0
        %v1305 = vsel %vm1277, %v1207, 0.0
        %v1306 = vsel %vm1278, %v1208, 0.0
        %v1307 = vsel %vm1279, %v1209, 0.0
        %v1308 = vsel %vm1280, %v1210, 0.0
        %v1309 = vsel %vm1281, %v1211, 0.0
        %v1310 = vsel %vm1282, %v1212, 0.0
        %v1311 = vsel %vm1283, %v1213, 0.0
        %v1312 = vsel %vm1284, %v1214, 0.0
        %v1313 = vsel %vm1285, %v1215, 0.0
        %v1314 = vsel %vm1286, %v1216, 0.0
        %v1315 = vsel %vm1287, %v1217, 0.0
        %v1316 = vsel %vm1288, %v1218, 0.0
        %v1317 = vsel %vm1289, %v1219, 0.0
        %v1318 = vsel %vm1290, %v1220, 0.0
        %v1319 = vsel %vm1291, %v1221, 0.0
        %v1320 = vsel %vm1292, %v1222, 0.0
        %v1321 = vsel %vm1293, %v1223, 0.0
        %v1322 = vsel %vm1294, %v1224, 0.0
        %v1323 = vsel %vm1295, %v1225, 0.0
        %v1324 = vsel %vm1296, %v1226, 0.0
        %v1325 = vsel %vm1297, %v1227, 0.0
        %v1326 = vsel %vm1298, %v1228, 0.0
        %v1327 = vsel %vm1299, %v1229, 0.0
        %v1328 = vsel %vm1300, %v1230, 0.0
        %v1329 = vsel %vm1301, %v1231, 0.0
        %v1330 = vpack.c.bf16 %v1306, %v1302
        %v1331 = vpack.c.bf16 %v1307, %v1303
        %v1332 = vpack.c.bf16 %v1308, %v1304
        %v1333 = vpack.c.bf16 %v1309, %v1305
        %v1334 = vpack.c.bf16 %v1314, %v1310
        %v1335 = vpack.c.bf16 %v1315, %v1311
        %v1336 = vpack.c.bf16 %v1316, %v1312
        %v1337 = vpack.c.bf16 %v1317, %v1313
        %v1338 = vpack.c.bf16 %v1322, %v1318
        %v1339 = vpack.c.bf16 %v1323, %v1319
        %v1340 = vpack.c.bf16 %v1324, %v1320
        %v1341 = vpack.c.bf16 %v1325, %v1321
        %v1342 = vpack.c.bf16 %v1326, %v1326
        %v1343 = vpack.c.bf16 %v1327, %v1327
        %v1344 = vpack.c.bf16 %v1328, %v1328
        %v1345 = vpack.c.bf16 %v1329, %v1329
        %v1346 = vld [vmem:[#allocation4] sm:$0xf]
        %v1347 = vld [vmem:[#allocation4 + $0x4] sm:$0xf]
        %v1348 = vld [vmem:[#allocation4 + $0x8] sm:$0xf]
        %v1349 = vld [vmem:[#allocation4 + $0xc] sm:$0xf]
        %v1350 = vld [vmem:[#allocation4 + $0x10] sm:$0xf]
        %v1351 = vld [vmem:[#allocation4 + $0x14] sm:$0xf]
        %v1352 = vld [vmem:[#allocation4 + $0x18] sm:$0xf]
        %v1353 = vld [vmem:[#allocation4 + $0x1c] sm:$0xf]
        %v1354 = vld [vmem:[#allocation4 + $0x20] sm:$0xf]
        %v1355 = vld [vmem:[#allocation4 + $0x24] sm:$0xf]
        %v1356 = vld [vmem:[#allocation4 + $0x28] sm:$0xf]
        %v1357 = vld [vmem:[#allocation4 + $0x2c] sm:$0xf]
        %v1358 = vld [vmem:[#allocation4 + $0x30] sm:$0xf]
        %v1359 = vld [vmem:[#allocation4 + $0x34] sm:$0xf]
        %v1360 = vld [vmem:[#allocation4 + $0x38] sm:$0xf]
        %v1361 = vld [vmem:[#allocation4 + $0x3c] sm:$0xf]
        %v1362 = vld [vmem:[#allocation4 + $0x40] sm:$0xf]
        %v1363 = vld [vmem:[#allocation4 + $0x44] sm:$0xf]
        %v1364 = vld [vmem:[#allocation4 + $0x48] sm:$0xf]
        %v1365 = vld [vmem:[#allocation4 + $0x4c] sm:$0xf]
        %v1366 = vld [vmem:[#allocation4 + $0x50] sm:$0xf]
        %v1367 = vld [vmem:[#allocation4 + $0x54] sm:$0xf]
        %v1368 = vld [vmem:[#allocation4 + $0x58] sm:$0xf]
        %v1369 = vld [vmem:[#allocation4 + $0x5c] sm:$0xf]
        %v1370 = vld [vmem:[#allocation4 + $0x60] sm:$0xf]
        %v1371 = vld [vmem:[#allocation4 + $0x64] sm:$0xf]
        %v1372 = vld [vmem:[#allocation4 + $0x68] sm:$0xf]
        %v1373 = vld [vmem:[#allocation4 + $0x6c] sm:$0xf]
        %v1374 = vld [vmem:[#allocation4 + $0x70] sm:$0xf]
        %v1375 = vld [vmem:[#allocation4 + $0x74] sm:$0xf]
        %v1376 = vld [vmem:[#allocation4 + $0x78] sm:$0xf]
        %v1377 = vld [vmem:[#allocation4 + $0x7c] sm:$0xf]
        %v1378 = vld [vmem:[#allocation4 + $0x80] sm:$0xf]
        %v1379 = vld [vmem:[#allocation4 + $0x84] sm:$0xf]
        %v1380 = vld [vmem:[#allocation4 + $0x88] sm:$0xf]
        %v1381 = vld [vmem:[#allocation4 + $0x8c] sm:$0xf]
        %v1382 = vld [vmem:[#allocation4 + $0x90] sm:$0xf]
        %v1383 = vld [vmem:[#allocation4 + $0x94] sm:$0xf]
        %v1384 = vld [vmem:[#allocation4 + $0x98] sm:$0xf]
        %v1385 = vld [vmem:[#allocation4 + $0x9c] sm:$0xf]
        %v1386 = vld [vmem:[#allocation4 + $0xa0] sm:$0xf]
        %v1387 = vld [vmem:[#allocation4 + $0xa4] sm:$0xf]
        %v1388 = vld [vmem:[#allocation4 + $0xa8] sm:$0xf]
        %v1389 = vld [vmem:[#allocation4 + $0xac] sm:$0xf]
        %v1390 = vld [vmem:[#allocation4 + $0xb0] sm:$0xf]
        %v1391 = vld [vmem:[#allocation4 + $0xb4] sm:$0xf]
        %v1392 = vld [vmem:[#allocation4 + $0xb8] sm:$0xf]
        %v1393 = vld [vmem:[#allocation4 + $0xbc] sm:$0xf]
        %v1394 = vld [vmem:[#allocation4 + $0xc0] sm:$0xf]
        %v1395 = vld [vmem:[#allocation4 + $0xc4] sm:$0xf]
        %v1396 = vld [vmem:[#allocation4 + $0xc8] sm:$0xf]
        %v1397 = vld [vmem:[#allocation4 + $0xcc] sm:$0xf]
        %v1398 = vld [vmem:[#allocation4 + $0xd0] sm:$0xf]
        %v1399 = vld [vmem:[#allocation4 + $0xd4] sm:$0xf]
        %v1400 = vld [vmem:[#allocation4 + $0xd8] sm:$0xf]
        %v1401 = vld [vmem:[#allocation4 + $0xdc] sm:$0xf]
        %v1402 = vld [vmem:[#allocation4 + $0xe0] sm:$0xf]
        %v1403 = vld [vmem:[#allocation4 + $0xe4] sm:$0xf]
        %v1404 = vld [vmem:[#allocation4 + $0xe8] sm:$0xf]
        %v1405 = vld [vmem:[#allocation4 + $0xec] sm:$0xf]
        %v1406 = vld [vmem:[#allocation4 + $0xf0] sm:$0xf]
        %v1407 = vld [vmem:[#allocation4 + $0xf4] sm:$0xf]
        %v1408 = vld [vmem:[#allocation4 + $0xf8] sm:$0xf]
        %v1409 = vld [vmem:[#allocation4 + $0xfc] sm:$0xf]
        %v1474 = vunpack.c.l.b16 %v1346
        %v1475 = vunpack.c.l.b16 %v1347
        %v1476 = vunpack.c.l.b16 %v1348
        %v1477 = vunpack.c.l.b16 %v1349
        %v1478 = vunpack.c.l.b16 %v1350
        %v1479 = vunpack.c.l.b16 %v1351
        %v1480 = vunpack.c.l.b16 %v1352
        %v1481 = vunpack.c.l.b16 %v1353
        %v1482 = vunpack.c.l.b16 %v1354
        %v1483 = vunpack.c.l.b16 %v1355
        %v1484 = vunpack.c.l.b16 %v1356
        %v1485 = vunpack.c.l.b16 %v1357
        %v1486 = vunpack.c.l.b16 %v1358
        %v1487 = vunpack.c.l.b16 %v1359
        %v1488 = vunpack.c.l.b16 %v1360
        %v1489 = vunpack.c.l.b16 %v1361
        %v1490 = vunpack.c.l.b16 %v1362
        %v1491 = vunpack.c.l.b16 %v1363
        %v1492 = vunpack.c.l.b16 %v1364
        %v1493 = vunpack.c.l.b16 %v1365
        %v1494 = vunpack.c.l.b16 %v1366
        %v1495 = vunpack.c.l.b16 %v1367
        %v1496 = vunpack.c.l.b16 %v1368
        %v1497 = vunpack.c.l.b16 %v1369
        %v1498 = vunpack.c.l.b16 %v1370
        %v1499 = vunpack.c.l.b16 %v1371
        %v1500 = vunpack.c.l.b16 %v1372
        %v1501 = vunpack.c.l.b16 %v1373
        %v1502 = vunpack.c.l.b16 %v1374
        %v1503 = vunpack.c.l.b16 %v1375
        %v1504 = vunpack.c.l.b16 %v1376
        %v1505 = vunpack.c.l.b16 %v1377
        %v1506 = vunpack.c.l.b16 %v1378
        %v1507 = vunpack.c.l.b16 %v1379
        %v1508 = vunpack.c.l.b16 %v1380
        %v1509 = vunpack.c.l.b16 %v1381
        %v1510 = vunpack.c.l.b16 %v1382
        %v1511 = vunpack.c.l.b16 %v1383
        %v1512 = vunpack.c.l.b16 %v1384
        %v1513 = vunpack.c.l.b16 %v1385
        %v1514 = vunpack.c.l.b16 %v1386
        %v1515 = vunpack.c.l.b16 %v1387
        %v1516 = vunpack.c.l.b16 %v1388
        %v1517 = vunpack.c.l.b16 %v1389
        %v1518 = vunpack.c.l.b16 %v1390
        %v1519 = vunpack.c.l.b16 %v1391
        %v1520 = vunpack.c.l.b16 %v1392
        %v1521 = vunpack.c.l.b16 %v1393
        %v1522 = vunpack.c.l.b16 %v1394
        %v1523 = vunpack.c.l.b16 %v1395
        %v1524 = vunpack.c.l.b16 %v1396
        %v1525 = vunpack.c.l.b16 %v1397
        %v1526 = vunpack.c.l.b16 %v1398
        %v1527 = vunpack.c.l.b16 %v1399
        %v1528 = vunpack.c.l.b16 %v1400
        %v1529 = vunpack.c.l.b16 %v1401
        %v1530 = vunpack.c.l.b16 %v1402
        %v1531 = vunpack.c.l.b16 %v1403
        %v1532 = vunpack.c.l.b16 %v1404
        %v1533 = vunpack.c.l.b16 %v1405
        %v1534 = vunpack.c.l.b16 %v1406
        %v1535 = vunpack.c.l.b16 %v1407
        %v1536 = vunpack.c.l.b16 %v1408
        %v1537 = vunpack.c.l.b16 %v1409
        %v1538 = vpack.c.b16 %v1475, %v1474
        %v1539 = vpack.c.b16 %v1477, %v1476
        %v1540 = vpack.c.b16 %v1479, %v1478
        %v1541 = vpack.c.b16 %v1481, %v1480
        %v1542 = vpack.c.b16 %v1483, %v1482
        %v1543 = vpack.c.b16 %v1485, %v1484
        %v1544 = vpack.c.b16 %v1487, %v1486
        %v1545 = vpack.c.b16 %v1489, %v1488
        %v1546 = vpack.c.b16 %v1491, %v1490
        %v1547 = vpack.c.b16 %v1493, %v1492
        %v1548 = vpack.c.b16 %v1495, %v1494
        %v1549 = vpack.c.b16 %v1497, %v1496
        %v1550 = vpack.c.b16 %v1499, %v1498
        %v1551 = vpack.c.b16 %v1501, %v1500
        %v1552 = vpack.c.b16 %v1503, %v1502
        %v1553 = vpack.c.b16 %v1505, %v1504
        %v1554 = vpack.c.b16 %v1507, %v1506
        %v1555 = vpack.c.b16 %v1509, %v1508
        %v1556 = vpack.c.b16 %v1511, %v1510
        %v1557 = vpack.c.b16 %v1513, %v1512
        %v1558 = vpack.c.b16 %v1515, %v1514
        %v1559 = vpack.c.b16 %v1517, %v1516
        %v1560 = vpack.c.b16 %v1519, %v1518
        %v1561 = vpack.c.b16 %v1521, %v1520
        %v1562 = vpack.c.b16 %v1523, %v1522
        %v1563 = vpack.c.b16 %v1525, %v1524
        %v1564 = vpack.c.b16 %v1527, %v1526
        %v1565 = vpack.c.b16 %v1529, %v1528
        %v1566 = vpack.c.b16 %v1531, %v1530
        %v1567 = vpack.c.b16 %v1533, %v1532
        %v1568 = vpack.c.b16 %v1535, %v1534
        %v1569 = vpack.c.b16 %v1537, %v1536
        %1602 = vmatprep.subr.bf16.mxu0 0
        %1603 = vmatpush1.bf16.msra.mxu0 %v1545
        %1604 = vmatprep.subr.bf16.mxu0 0
        %1605 = vmatpush1.bf16.msra.mxu0 %v1544
        %1606 = vmatprep.subr.bf16.mxu0 0
        %1607 = vmatpush1.bf16.msra.mxu0 %v1543
        %1608 = vmatprep.subr.bf16.mxu0 0
        %1609 = vmatpush1.bf16.msra.mxu0 %v1542
        %1610 = vmatprep.subr.bf16.mxu0 0
        %1611 = vmatpush1.bf16.msra.mxu0 %v1541
        %1612 = vmatprep.subr.bf16.mxu0 0
        %1613 = vmatpush1.bf16.msra.mxu0 %v1540
        %1614 = vmatprep.subr.bf16.mxu0 0
        %1615 = vmatpush1.bf16.msra.mxu0 %v1539
        %1616 = vmatprep.subr.bf16.mxu0 0
        %1617 = vmatpush1.bf16.msra.mxu0 %v1538
        %1618 = vmatprep.subr.bf16.mxu0 0
        %1619 = vmatpush2.bf16.msra.mxu0 %v1553
        %1620 = vmatprep.subr.bf16.mxu0 0
        %1621 = vmatpush2.bf16.msra.mxu0 %v1552
        %1622 = vmatprep.subr.bf16.mxu0 0
        %1623 = vmatpush2.bf16.msra.mxu0 %v1551
        %1624 = vmatprep.subr.bf16.mxu0 0
        %1625 = vmatpush2.bf16.msra.mxu0 %v1550
        %1626 = vmatprep.subr.bf16.mxu0 0
        %1627 = vmatpush2.bf16.msra.mxu0 %v1549
        %1628 = vmatprep.subr.bf16.mxu0 0
        %1629 = vmatpush2.bf16.msra.mxu0 %v1548
        %1630 = vmatprep.subr.bf16.mxu0 0
        %1631 = vmatpush2.bf16.msra.mxu0 %v1547
        %1632 = vmatprep.subr.bf16.mxu0 0
        %1633 = vmatpush2.bf16.msra.mxu0 %v1546
        %1634 = vmatprep.mubr.bf16.mxu0 %v1331
        %1635 = vmatmul.mubr.bf16.gmra.mxu0 %v1330
        %v1636 = vpop.f32.mrf.mxu0
        %v1637 = vadd.f32 0.0, %v1636
        %v1638 = vpop.f32.mrf.mxu0
        %v1639 = vpop.f32.mrf.mxu0
        %v1640 = vadd.f32 0.0, %v1639
        %v1641 = vpop.f32.mrf.mxu0
        %1642 = vmatprep.mubr.bf16.mxu0 %v1335
        %1643 = vmatmul.mubr.bf16.gmra.mxu0 %v1334
        %v1644 = vpop.f32.mrf.mxu0
        %v1645 = vadd.f32 0.0, %v1644
        %v1646 = vpop.f32.mrf.mxu0
        %v1647 = vpop.f32.mrf.mxu0
        %v1648 = vadd.f32 0.0, %v1647
        %v1649 = vpop.f32.mrf.mxu0
        %1650 = vmatprep.mubr.bf16.mxu0 %v1339
        %1651 = vmatmul.mubr.bf16.gmra.mxu0 %v1338
        %v1652 = vpop.f32.mrf.mxu0
        %v1653 = vadd.f32 0.0, %v1652
        %v1654 = vpop.f32.mrf.mxu0
        %v1655 = vpop.f32.mrf.mxu0
        %v1656 = vadd.f32 0.0, %v1655
        %v1657 = vpop.f32.mrf.mxu0
        %1658 = vmatprep.mubr.bf16.mxu0 %v1343
        %1659 = vmatmul.mubr.bf16.gmra.mxu0 %v1342
        %v1660 = vpop.f32.mrf.mxu0
        %v1661 = vadd.f32 0.0, %v1660
        %v1662 = vpop.f32.mrf.mxu0
        %v1663 = vpop.f32.mrf.mxu0
        %v1664 = vpop.f32.mrf.mxu0
        %1665 = vdwg.mxu0
        %1666 = vmatprep.subr.bf16.mxu0 0
        %1667 = vmatpush1.bf16.msra.mxu0 %v1561
        %1668 = vmatprep.subr.bf16.mxu0 0
        %1669 = vmatpush1.bf16.msra.mxu0 %v1560
        %1670 = vmatprep.subr.bf16.mxu0 0
        %1671 = vmatpush1.bf16.msra.mxu0 %v1559
        %1672 = vmatprep.subr.bf16.mxu0 0
        %1673 = vmatpush1.bf16.msra.mxu0 %v1558
        %1674 = vmatprep.subr.bf16.mxu0 0
        %1675 = vmatpush1.bf16.msra.mxu0 %v1557
        %1676 = vmatprep.subr.bf16.mxu0 0
        %1677 = vmatpush1.bf16.msra.mxu0 %v1556
        %1678 = vmatprep.subr.bf16.mxu0 0
        %1679 = vmatpush1.bf16.msra.mxu0 %v1555
        %1680 = vmatprep.subr.bf16.mxu0 0
        %1681 = vmatpush1.bf16.msra.mxu0 %v1554
        %1682 = vmatprep.subr.bf16.mxu0 0
        %1683 = vmatpush2.bf16.msra.mxu0 %v1569
        %1684 = vmatprep.subr.bf16.mxu0 0
        %1685 = vmatpush2.bf16.msra.mxu0 %v1568
        %1686 = vmatprep.subr.bf16.mxu0 0
        %1687 = vmatpush2.bf16.msra.mxu0 %v1567
        %1688 = vmatprep.subr.bf16.mxu0 0
        %1689 = vmatpush2.bf16.msra.mxu0 %v1566
        %1690 = vmatprep.subr.bf16.mxu0 0
        %1691 = vmatpush2.bf16.msra.mxu0 %v1565
        %1692 = vmatprep.subr.bf16.mxu0 0
        %1693 = vmatpush2.bf16.msra.mxu0 %v1564
        %1694 = vmatprep.subr.bf16.mxu0 0
        %1695 = vmatpush2.bf16.msra.mxu0 %v1563
        %1696 = vmatprep.subr.bf16.mxu0 0
        %1697 = vmatpush2.bf16.msra.mxu0 %v1562
        %1698 = vmatprep.mubr.bf16.mxu0 %v1333
        %1699 = vmatmul.mubr.bf16.gmra.mxu0 %v1332
        %v1700 = vpop.f32.mrf.mxu0
        %v1701 = vadd.f32 %v1637, %v1700
        %v1702 = vpop.f32.mrf.mxu0
        %v1703 = vpop.f32.mrf.mxu0
        %v1704 = vadd.f32 %v1640, %v1703
        %v1705 = vpop.f32.mrf.mxu0
        %1706 = vmatprep.mubr.bf16.mxu0 %v1337
        %1707 = vmatmul.mubr.bf16.gmra.mxu0 %v1336
        %v1708 = vpop.f32.mrf.mxu0
        %v1709 = vadd.f32 %v1645, %v1708
        %v1710 = vpop.f32.mrf.mxu0
        %v1711 = vpop.f32.mrf.mxu0
        %v1712 = vadd.f32 %v1648, %v1711
        %v1713 = vpop.f32.mrf.mxu0
        %1714 = vmatprep.mubr.bf16.mxu0 %v1341
        %1715 = vmatmul.mubr.bf16.gmra.mxu0 %v1340
        %v1716 = vpop.f32.mrf.mxu0
        %v1717 = vadd.f32 %v1653, %v1716
        %v1718 = vpop.f32.mrf.mxu0
        %v1719 = vpop.f32.mrf.mxu0
        %v1720 = vadd.f32 %v1656, %v1719
        %v1721 = vpop.f32.mrf.mxu0
        %1722 = vmatprep.mubr.bf16.mxu0 %v1345
        %1723 = vmatmul.mubr.bf16.gmra.mxu0 %v1344
        %v1724 = vpop.f32.mrf.mxu0
        %v1725 = vadd.f32 %v1661, %v1724
        %v1726 = vpop.f32.mrf.mxu0
        %v1727 = vpop.f32.mrf.mxu0
        %v1728 = vpop.f32.mrf.mxu0
        %1729 = vdwg.mxu0
        %v1730 = vld [vmem:[#allocation6] sm:$0xf]
        %v1731 = vld [vmem:[#allocation6 + $0x4] sm:$0xf]
        %v1732 = vld [vmem:[#allocation6 + $0x8] sm:$0xf]
        %v1733 = vld [vmem:[#allocation6 + $0xc] sm:$0xf]
        %v1734 = vld [vmem:[#allocation6 + $0x10] sm:$0xf]
        %v1735 = vld [vmem:[#allocation6 + $0x14] sm:$0xf]
        %v1736 = vld [vmem:[#allocation6 + $0x18] sm:$0xf]
        %v1737 = vld [vmem:[#allocation6 + $0x1c] sm:$0xf]
        %v1738 = vpack.c.bf16 %v1704, %v1701
        %v1739 = vpack.c.bf16 %v1712, %v1709
        %v1740 = vpack.c.bf16 %v1720, %v1717
        %v1741 = vpack.c.bf16 %v1725, %v1725
        %v1750 = vunpack.c.l.b16 %v1730
        %v1751 = vunpack.c.l.b16 %v1731
        %v1752 = vunpack.c.l.b16 %v1732
        %v1753 = vunpack.c.l.b16 %v1733
        %v1754 = vunpack.c.l.b16 %v1734
        %v1755 = vunpack.c.l.b16 %v1735
        %v1756 = vunpack.c.l.b16 %v1736
        %v1757 = vunpack.c.l.b16 %v1737
        %v1758 = vpack.c.b16 %v1751, %v1750
        %v1759 = vpack.c.b16 %v1753, %v1752
        %v1760 = vpack.c.b16 %v1755, %v1754
        %v1761 = vpack.c.b16 %v1757, %v1756
        %vm1762 = vcmask 457728
        %v1764 = vsel %vm1762, %v1758, 0
        %v1767 = vsel %vm1762, %v1759, 0
        %v1770 = vsel %vm1762, %v1760, 0
        %v1773 = vsel %vm1762, %v1761, 0
        %vm1775 = vcmask 1043456
        %v1777 = vsel %vm1775, %v1741, 0
        %1779 = vmatprep.subr.bf16.mxu0 0
        %1780 = vmatpush1.bf16.msra.mxu0 0
        %1781 = vmatprep.subr.bf16.mxu0 0
        %1782 = vmatpush1.bf16.msra.mxu0 0
        %1783 = vmatprep.subr.bf16.mxu0 0
        %1784 = vmatpush1.bf16.msra.mxu0 0
        %1785 = vmatprep.subr.bf16.mxu0 0
        %1786 = vmatpush1.bf16.msra.mxu0 0
        %1787 = vmatprep.subr.bf16.mxu0 0
        %1788 = vmatpush1.bf16.msra.mxu0 %v1777
        %1789 = vmatprep.subr.bf16.mxu0 0
        %1790 = vmatpush1.bf16.msra.mxu0 %v1740
        %1791 = vmatprep.subr.bf16.mxu0 0
        %1792 = vmatpush1.bf16.msra.mxu0 %v1739
        %1793 = vmatprep.subr.bf16.mxu0 0
        %1794 = vmatpush1.bf16.msra.mxu0 %v1738
        %1795 = vmatprep.subr.bf16.mxu0 0
        %1796 = vmatpush2.bf16.msra.mxu0 0
        %1797 = vmatprep.subr.bf16.mxu0 0
        %1798 = vmatpush2.bf16.msra.mxu0 0
        %1799 = vmatprep.subr.bf16.mxu0 0
        %1800 = vmatpush2.bf16.msra.mxu0 0
        %1801 = vmatprep.subr.bf16.mxu0 0
        %1802 = vmatpush2.bf16.msra.mxu0 0
        %1803 = vmatprep.subr.bf16.mxu0 0
        %1804 = vmatpush2.bf16.msra.mxu0 0
        %1805 = vmatprep.subr.bf16.mxu0 0
        %1806 = vmatpush2.bf16.msra.mxu0 0
        %1807 = vmatprep.subr.bf16.mxu0 0
        %1808 = vmatpush2.bf16.msra.mxu0 0
        %1809 = vmatprep.subr.bf16.mxu0 0
        %1810 = vmatpush2.bf16.msra.mxu0 0
        %1811 = vmatprep.mubr.bf16.mxu0 0
        %1812 = vmatmul.mubr.bf16.gmra.mxu0 %v1764
        %v1813 = vpop.f32.mrf.mxu0
        %v1814 = vadd.f32 0.0, %v1813
        %v1815 = vpop.f32.mrf.mxu0
        %v1816 = vpop.f32.mrf.mxu0
        %v1817 = vadd.f32 0.0, %v1816
        %v1818 = vpop.f32.mrf.mxu0
        %1819 = vmatprep.mubr.bf16.mxu0 0
        %1820 = vmatmul.mubr.bf16.gmra.mxu0 %v1767
        %v1821 = vpop.f32.mrf.mxu0
        %v1822 = vadd.f32 0.0, %v1821
        %v1823 = vpop.f32.mrf.mxu0
        %v1824 = vpop.f32.mrf.mxu0
        %v1825 = vadd.f32 0.0, %v1824
        %v1826 = vpop.f32.mrf.mxu0
        %1827 = vmatprep.mubr.bf16.mxu0 0
        %1828 = vmatmul.mubr.bf16.gmra.mxu0 %v1770
        %v1829 = vpop.f32.mrf.mxu0
        %v1830 = vadd.f32 0.0, %v1829
        %v1831 = vpop.f32.mrf.mxu0
        %v1832 = vpop.f32.mrf.mxu0
        %v1833 = vadd.f32 0.0, %v1832
        %v1834 = vpop.f32.mrf.mxu0
        %1835 = vmatprep.mubr.bf16.mxu0 0
        %1836 = vmatmul.mubr.bf16.gmra.mxu0 %v1773
        %v1837 = vpop.f32.mrf.mxu0
        %v1838 = vadd.f32 0.0, %v1837
        %v1839 = vpop.f32.mrf.mxu0
        %v1840 = vpop.f32.mrf.mxu0
        %v1841 = vadd.f32 0.0, %v1840
        %v1842 = vpop.f32.mrf.mxu0
        %1843 = vdwg.mxu0
        %v1844 = vld [vmem:[#allocation7] sm:$0xf]
        %v1845 = vld [vmem:[#allocation7 + $0x4] sm:$0xf]
        %v1846 = vld [vmem:[#allocation7 + $0x8] sm:$0xf]
        %v1847 = vld [vmem:[#allocation7 + $0xc] sm:$0xf]
        %v1848 = vld [vmem:[#allocation7 + $0x10] sm:$0xf]
        %v1849 = vld [vmem:[#allocation7 + $0x14] sm:$0xf]
        %v1850 = vld [vmem:[#allocation7 + $0x18] sm:$0xf]
        %v1851 = vld [vmem:[#allocation7 + $0x1c] sm:$0xf]
        %v1852 = vld [vmem:[#allocation7 + $0x20] sm:$0xf]
        %v1853 = vld [vmem:[#allocation7 + $0x24] sm:$0xf]
        %v1854 = vld [vmem:[#allocation7 + $0x28] sm:$0xf]
        %v1855 = vld [vmem:[#allocation7 + $0x2c] sm:$0xf]
        %v1856 = vld [vmem:[#allocation7 + $0x30] sm:$0xf]
        %v1857 = vld [vmem:[#allocation7 + $0x34] sm:$0xf]
        %v1858 = vld [vmem:[#allocation7 + $0x38] sm:$0xf]
        %v1859 = vld [vmem:[#allocation7 + $0x3c] sm:$0xf]
        %v1876 = vunpack.c.l.b16 %v1844
        %v1877 = vunpack.c.l.b16 %v1845
        %v1878 = vunpack.c.l.b16 %v1846
        %v1879 = vunpack.c.l.b16 %v1847
        %v1880 = vunpack.c.l.b16 %v1848
        %v1881 = vunpack.c.l.b16 %v1849
        %v1882 = vunpack.c.l.b16 %v1850
        %v1883 = vunpack.c.l.b16 %v1851
        %v1884 = vunpack.c.l.b16 %v1852
        %v1885 = vunpack.c.l.b16 %v1853
        %v1886 = vunpack.c.l.b16 %v1854
        %v1887 = vunpack.c.l.b16 %v1855
        %v1888 = vunpack.c.l.b16 %v1856
        %v1889 = vunpack.c.l.b16 %v1857
        %v1890 = vunpack.c.l.b16 %v1858
        %v1891 = vunpack.c.l.b16 %v1859
        %v1892 = vpack.c.b16 %v1877, %v1876
        %v1893 = vpack.c.b16 %v1879, %v1878
        %v1894 = vpack.c.b16 %v1881, %v1880
        %v1895 = vpack.c.b16 %v1883, %v1882
        %v1896 = vpack.c.b16 %v1885, %v1884
        %v1897 = vpack.c.b16 %v1887, %v1886
        %v1898 = vpack.c.b16 %v1889, %v1888
        %v1899 = vpack.c.b16 %v1891, %v1890
        %1908 = vmatprep.subr.bf16.mxu0 0
        %1909 = vmatpush1.bf16.msra.mxu0 %v1899
        %1910 = vmatprep.subr.bf16.mxu0 0
        %1911 = vmatpush1.bf16.msra.mxu0 %v1898
        %1912 = vmatprep.subr.bf16.mxu0 0
        %1913 = vmatpush1.bf16.msra.mxu0 %v1897
        %1914 = vmatprep.subr.bf16.mxu0 0
        %1915 = vmatpush1.bf16.msra.mxu0 %v1896
        %1916 = vmatprep.subr.bf16.mxu0 0
        %1917 = vmatpush1.bf16.msra.mxu0 %v1895
        %1918 = vmatprep.subr.bf16.mxu0 0
        %1919 = vmatpush1.bf16.msra.mxu0 %v1894
        %1920 = vmatprep.subr.bf16.mxu0 0
        %1921 = vmatpush1.bf16.msra.mxu0 %v1893
        %1922 = vmatprep.subr.bf16.mxu0 0
        %1923 = vmatpush1.bf16.msra.mxu0 %v1892
        %1924 = vmatprep.subr.bf16.mxu0 0
        %1925 = vmatpush2.bf16.msra.mxu0 0
        %1926 = vmatprep.subr.bf16.mxu0 0
        %1927 = vmatpush2.bf16.msra.mxu0 0
        %1928 = vmatprep.subr.bf16.mxu0 0
        %1929 = vmatpush2.bf16.msra.mxu0 0
        %1930 = vmatprep.subr.bf16.mxu0 0
        %1931 = vmatpush2.bf16.msra.mxu0 0
        %1932 = vmatprep.subr.bf16.mxu0 0
        %1933 = vmatpush2.bf16.msra.mxu0 0
        %1934 = vmatprep.subr.bf16.mxu0 0
        %1935 = vmatpush2.bf16.msra.mxu0 0
        %1936 = vmatprep.subr.bf16.mxu0 0
        %1937 = vmatpush2.bf16.msra.mxu0 0
        %1938 = vmatprep.subr.bf16.mxu0 0
        %1939 = vmatpush2.bf16.msra.mxu0 0
        %1940 = vmatprep.mubr.bf16.mxu0 0
        %1941 = vmatmul.mubr.bf16.gmra.mxu0 %v710
        %v1942 = vpop.f32.mrf.mxu0
        %v1943 = vadd.f32 %v1814, %v1942
        %v1944 = vpop.f32.mrf.mxu0
        %v1945 = vpop.f32.mrf.mxu0
        %v1946 = vadd.f32 %v1817, %v1945
        %v1947 = vpop.f32.mrf.mxu0
        %1948 = vmatprep.mubr.bf16.mxu0 0
        %1949 = vmatmul.mubr.bf16.gmra.mxu0 %v711
        %v1950 = vpop.f32.mrf.mxu0
        %v1951 = vadd.f32 %v1822, %v1950
        %v1952 = vpop.f32.mrf.mxu0
        %v1953 = vpop.f32.mrf.mxu0
        %v1954 = vadd.f32 %v1825, %v1953
        %v1955 = vpop.f32.mrf.mxu0
        %1956 = vmatprep.mubr.bf16.mxu0 0
        %1957 = vmatmul.mubr.bf16.gmra.mxu0 %v712
        %v1958 = vpop.f32.mrf.mxu0
        %v1959 = vadd.f32 %v1830, %v1958
        %v1960 = vpop.f32.mrf.mxu0
        %v1961 = vpop.f32.mrf.mxu0
        %v1962 = vadd.f32 %v1833, %v1961
        %v1963 = vpop.f32.mrf.mxu0
        %1964 = vmatprep.mubr.bf16.mxu0 0
        %1965 = vmatmul.mubr.bf16.gmra.mxu0 %v713
        %v1966 = vpop.f32.mrf.mxu0
        %v1967 = vadd.f32 %v1838, %v1966
        %v1968 = vpop.f32.mrf.mxu0
        %v1969 = vpop.f32.mrf.mxu0
        %v1970 = vadd.f32 %v1841, %v1969
        %v1971 = vpop.f32.mrf.mxu0
        %1972 = vdwg.mxu0
        %v1973 = vld [vmem:[#allocation9] sm:$0x1]
        %v1975 = vlaneseq
        %v1976 = vshrl.u32 %v1975, 7
        %v1977 = vsub.s32 0, %v1976
        %v1978 = vrot.slane %v1973, %v1977
        %v1980 = vadd.f32 %v1943, %v1978
        %v1981 = vadd.f32 %v1946, %v1978
        %v1982 = vadd.f32 %v1951, %v1978
        %v1983 = vadd.f32 %v1954, %v1978
        %v1984 = vadd.f32 %v1959, %v1978
        %v1985 = vadd.f32 %v1962, %v1978
        %v1986 = vadd.f32 %v1967, %v1978
        %v1987 = vadd.f32 %v1970, %v1978
        %v1988 = vmax.f32 %v1980, 0.0
        %v1989 = vmax.f32 %v1981, 0.0
        %v1990 = vmax.f32 %v1982, 0.0
        %v1991 = vmax.f32 %v1983, 0.0
        %v1992 = vmax.f32 %v1984, 0.0
        %v1993 = vmax.f32 %v1985, 0.0
        %v1994 = vmax.f32 %v1986, 0.0
        %v1995 = vmax.f32 %v1987, 0.0
        %v1996 = vpack.c.bf16 %v1988, %v1988
        %v1997 = vpack.c.bf16 %v1989, %v1989
        %v1998 = vpack.c.bf16 %v1990, %v1990
        %v1999 = vpack.c.bf16 %v1991, %v1991
        %v2000 = vpack.c.bf16 %v1992, %v1992
        %v2001 = vpack.c.bf16 %v1993, %v1993
        %v2002 = vpack.c.bf16 %v1994, %v1994
        %v2003 = vpack.c.bf16 %v1995, %v1995
        %v2004 = vld [vmem:[%s11] sm:$0xf]
        %v2005 = vld [vmem:[%s12] sm:$0xff]
        %2007 = vset.pattern.permute.xlu0 0
        %2008 = vperm.xlu0 %2007, %v2005
        %v2009 = vpop.permute.xlu0 %2008
        %2011 = vmatprep.subr.bf16.mxu0 0
        %2012 = vmatpush1.bf16.xpose.msra.mxu0 0
        %2013 = vmatprep.subr.bf16.mxu0 0
        %2014 = vmatpush1.bf16.xpose.msra.mxu0 0
        %2015 = vmatprep.subr.bf16.mxu0 0
        %2016 = vmatpush1.bf16.xpose.msra.mxu0 0
        %2017 = vmatprep.subr.bf16.mxu0 0
        %2018 = vmatpush1.bf16.xpose.msra.mxu0 0
        %2019 = vmatprep.subr.bf16.mxu0 0
        %2020 = vmatpush1.bf16.xpose.msra.mxu0 0
        %2021 = vmatprep.subr.bf16.mxu0 0
        %2022 = vmatpush1.bf16.xpose.msra.mxu0 0
        %2023 = vmatprep.subr.bf16.mxu0 0
        %2024 = vmatpush1.bf16.xpose.msra.mxu0 0
        %2025 = vmatprep.subr.bf16.mxu0 0
        %2026 = vmatpush1.bf16.xpose.msra.mxu0 %v1996
        %2027 = vmatprep.subr.bf16.mxu0 0
        %2028 = vmatpush2.bf16.xpose.msra.mxu0 0
        %2029 = vmatprep.subr.bf16.mxu0 0
        %2030 = vmatpush2.bf16.xpose.msra.mxu0 0
        %2031 = vmatprep.subr.bf16.mxu0 0
        %2032 = vmatpush2.bf16.xpose.msra.mxu0 0
        %2033 = vmatprep.subr.bf16.mxu0 0
        %2034 = vmatpush2.bf16.xpose.msra.mxu0 0
        %2035 = vmatprep.subr.bf16.mxu0 0
        %2036 = vmatpush2.bf16.xpose.msra.mxu0 0
        %2037 = vmatprep.subr.bf16.mxu0 0
        %2038 = vmatpush2.bf16.xpose.msra.mxu0 0
        %2039 = vmatprep.subr.bf16.mxu0 0
        %2040 = vmatpush2.bf16.xpose.msra.mxu0 0
        %2041 = vmatprep.subr.bf16.mxu0 0
        %2042 = vmatpush2.bf16.xpose.msra.mxu0 0
        %2043 = vmatprep.mubr.bf16.mxu0 0
        %2044 = vmatmul.mubr.bf16.gmra.mxu0 %v2004
        %v2045 = vpop.f32.mrf.mxu0
        %v2046 = vadd.f32 %v2009, %v2045
        %v2047 = vpop.f32.mrf.mxu0
        %v2048 = vpop.f32.mrf.mxu0
        %v2049 = vpop.f32.mrf.mxu0
        %2050 = vdwg.mxu0
        %2051 = vmatprep.subr.bf16.mxu0 0
        %2052 = vmatpush1.bf16.xpose.msra.mxu0 0
        %2053 = vmatprep.subr.bf16.mxu0 0
        %2054 = vmatpush1.bf16.xpose.msra.mxu0 0
        %2055 = vmatprep.subr.bf16.mxu0 0
        %2056 = vmatpush1.bf16.xpose.msra.mxu0 0
        %2057 = vmatprep.subr.bf16.mxu0 0
        %2058 = vmatpush1.bf16.xpose.msra.mxu0 0
        %2059 = vmatprep.subr.bf16.mxu0 0
        %2060 = vmatpush1.bf16.xpose.msra.mxu0 0
        %2061 = vmatprep.subr.bf16.mxu0 0
        %2062 = vmatpush1.bf16.xpose.msra.mxu0 0
        %2063 = vmatprep.subr.bf16.mxu0 0
        %2064 = vmatpush1.bf16.xpose.msra.mxu0 0
        %2065 = vmatprep.subr.bf16.mxu0 0
        %2066 = vmatpush1.bf16.xpose.msra.mxu0 %v1997
        %2067 = vmatprep.subr.bf16.mxu0 0
        %2068 = vmatpush2.bf16.xpose.msra.mxu0 0
        %2069 = vmatprep.subr.bf16.mxu0 0
        %2070 = vmatpush2.bf16.xpose.msra.mxu0 0
        %2071 = vmatprep.subr.bf16.mxu0 0
        %2072 = vmatpush2.bf16.xpose.msra.mxu0 0
        %2073 = vmatprep.subr.bf16.mxu0 0
        %2074 = vmatpush2.bf16.xpose.msra.mxu0 0
        %2075 = vmatprep.subr.bf16.mxu0 0
        %2076 = vmatpush2.bf16.xpose.msra.mxu0 0
        %2077 = vmatprep.subr.bf16.mxu0 0
        %2078 = vmatpush2.bf16.xpose.msra.mxu0 0
        %2079 = vmatprep.subr.bf16.mxu0 0
        %2080 = vmatpush2.bf16.xpose.msra.mxu0 0
        %2081 = vmatprep.subr.bf16.mxu0 0
        %2082 = vmatpush2.bf16.xpose.msra.mxu0 0
        %2083 = vmatprep.mubr.bf16.mxu0 0
        %2084 = vmatmul.mubr.bf16.gmra.mxu0 %v2004
        %v2085 = vpop.f32.mrf.mxu0
        %v2086 = vadd.f32 %v2009, %v2085
        %v2087 = vpop.f32.mrf.mxu0
        %v2088 = vpop.f32.mrf.mxu0
        %v2089 = vpop.f32.mrf.mxu0
        %2090 = vdwg.mxu0
        %2091 = vmatprep.subr.bf16.mxu0 0
        %2092 = vmatpush1.bf16.xpose.msra.mxu0 0
        %2093 = vmatprep.subr.bf16.mxu0 0
        %2094 = vmatpush1.bf16.xpose.msra.mxu0 0
        %2095 = vmatprep.subr.bf16.mxu0 0
        %2096 = vmatpush1.bf16.xpose.msra.mxu0 0
        %2097 = vmatprep.subr.bf16.mxu0 0
        %2098 = vmatpush1.bf16.xpose.msra.mxu0 0
        %2099 = vmatprep.subr.bf16.mxu0 0
        %2100 = vmatpush1.bf16.xpose.msra.mxu0 0
        %2101 = vmatprep.subr.bf16.mxu0 0
        %2102 = vmatpush1.bf16.xpose.msra.mxu0 0
        %2103 = vmatprep.subr.bf16.mxu0 0
        %2104 = vmatpush1.bf16.xpose.msra.mxu0 0
        %2105 = vmatprep.subr.bf16.mxu0 0
        %2106 = vmatpush1.bf16.xpose.msra.mxu0 %v1998
        %2107 = vmatprep.subr.bf16.mxu0 0
        %2108 = vmatpush2.bf16.xpose.msra.mxu0 0
        %2109 = vmatprep.subr.bf16.mxu0 0
        %2110 = vmatpush2.bf16.xpose.msra.mxu0 0
        %2111 = vmatprep.subr.bf16.mxu0 0
        %2112 = vmatpush2.bf16.xpose.msra.mxu0 0
        %2113 = vmatprep.subr.bf16.mxu0 0
        %2114 = vmatpush2.bf16.xpose.msra.mxu0 0
        %2115 = vmatprep.subr.bf16.mxu0 0
        %2116 = vmatpush2.bf16.xpose.msra.mxu0 0
        %2117 = vmatprep.subr.bf16.mxu0 0
        %2118 = vmatpush2.bf16.xpose.msra.mxu0 0
        %2119 = vmatprep.subr.bf16.mxu0 0
        %2120 = vmatpush2.bf16.xpose.msra.mxu0 0
        %2121 = vmatprep.subr.bf16.mxu0 0
        %2122 = vmatpush2.bf16.xpose.msra.mxu0 0
        %2123 = vmatprep.mubr.bf16.mxu0 0
        %2124 = vmatmul.mubr.bf16.gmra.mxu0 %v2004
        %v2125 = vpop.f32.mrf.mxu0
        %v2126 = vadd.f32 %v2009, %v2125
        %v2127 = vpop.f32.mrf.mxu0
        %v2128 = vpop.f32.mrf.mxu0
        %v2129 = vpop.f32.mrf.mxu0
        %2130 = vdwg.mxu0
        %2131 = vmatprep.subr.bf16.mxu0 0
        %2132 = vmatpush1.bf16.xpose.msra.mxu0 0
        %2133 = vmatprep.subr.bf16.mxu0 0
        %2134 = vmatpush1.bf16.xpose.msra.mxu0 0
        %2135 = vmatprep.subr.bf16.mxu0 0
        %2136 = vmatpush1.bf16.xpose.msra.mxu0 0
        %2137 = vmatprep.subr.bf16.mxu0 0
        %2138 = vmatpush1.bf16.xpose.msra.mxu0 0
        %2139 = vmatprep.subr.bf16.mxu0 0
        %2140 = vmatpush1.bf16.xpose.msra.mxu0 0
        %2141 = vmatprep.subr.bf16.mxu0 0
        %2142 = vmatpush1.bf16.xpose.msra.mxu0 0
        %2143 = vmatprep.subr.bf16.mxu0 0
        %2144 = vmatpush1.bf16.xpose.msra.mxu0 0
        %2145 = vmatprep.subr.bf16.mxu0 0
        %2146 = vmatpush1.bf16.xpose.msra.mxu0 %v1999
        %2147 = vmatprep.subr.bf16.mxu0 0
        %2148 = vmatpush2.bf16.xpose.msra.mxu0 0
        %2149 = vmatprep.subr.bf16.mxu0 0
        %2150 = vmatpush2.bf16.xpose.msra.mxu0 0
        %2151 = vmatprep.subr.bf16.mxu0 0
        %2152 = vmatpush2.bf16.xpose.msra.mxu0 0
        %2153 = vmatprep.subr.bf16.mxu0 0
        %2154 = vmatpush2.bf16.xpose.msra.mxu0 0
        %2155 = vmatprep.subr.bf16.mxu0 0
        %2156 = vmatpush2.bf16.xpose.msra.mxu0 0
        %2157 = vmatprep.subr.bf16.mxu0 0
        %2158 = vmatpush2.bf16.xpose.msra.mxu0 0
        %2159 = vmatprep.subr.bf16.mxu0 0
        %2160 = vmatpush2.bf16.xpose.msra.mxu0 0
        %2161 = vmatprep.subr.bf16.mxu0 0
        %2162 = vmatpush2.bf16.xpose.msra.mxu0 0
        %2163 = vmatprep.mubr.bf16.mxu0 0
        %2164 = vmatmul.mubr.bf16.gmra.mxu0 %v2004
        %v2165 = vpop.f32.mrf.mxu0
        %v2166 = vadd.f32 %v2009, %v2165
        %v2167 = vpop.f32.mrf.mxu0
        %v2168 = vpop.f32.mrf.mxu0
        %v2169 = vpop.f32.mrf.mxu0
        %2170 = vdwg.mxu0
        %2171 = vmatprep.subr.bf16.mxu0 0
        %2172 = vmatpush1.bf16.xpose.msra.mxu0 0
        %2173 = vmatprep.subr.bf16.mxu0 0
        %2174 = vmatpush1.bf16.xpose.msra.mxu0 0
        %2175 = vmatprep.subr.bf16.mxu0 0
        %2176 = vmatpush1.bf16.xpose.msra.mxu0 0
        %2177 = vmatprep.subr.bf16.mxu0 0
        %2178 = vmatpush1.bf16.xpose.msra.mxu0 0
        %2179 = vmatprep.subr.bf16.mxu0 0
        %2180 = vmatpush1.bf16.xpose.msra.mxu0 0
        %2181 = vmatprep.subr.bf16.mxu0 0
        %2182 = vmatpush1.bf16.xpose.msra.mxu0 0
        %2183 = vmatprep.subr.bf16.mxu0 0
        %2184 = vmatpush1.bf16.xpose.msra.mxu0 0
        %2185 = vmatprep.subr.bf16.mxu0 0
        %2186 = vmatpush1.bf16.xpose.msra.mxu0 %v2000
        %2187 = vmatprep.subr.bf16.mxu0 0
        %2188 = vmatpush2.bf16.xpose.msra.mxu0 0
        %2189 = vmatprep.subr.bf16.mxu0 0
        %2190 = vmatpush2.bf16.xpose.msra.mxu0 0
        %2191 = vmatprep.subr.bf16.mxu0 0
        %2192 = vmatpush2.bf16.xpose.msra.mxu0 0
        %2193 = vmatprep.subr.bf16.mxu0 0
        %2194 = vmatpush2.bf16.xpose.msra.mxu0 0
        %2195 = vmatprep.subr.bf16.mxu0 0
        %2196 = vmatpush2.bf16.xpose.msra.mxu0 0
        %2197 = vmatprep.subr.bf16.mxu0 0
        %2198 = vmatpush2.bf16.xpose.msra.mxu0 0
        %2199 = vmatprep.subr.bf16.mxu0 0
        %2200 = vmatpush2.bf16.xpose.msra.mxu0 0
        %2201 = vmatprep.subr.bf16.mxu0 0
        %2202 = vmatpush2.bf16.xpose.msra.mxu0 0
        %2203 = vmatprep.mubr.bf16.mxu0 0
        %2204 = vmatmul.mubr.bf16.gmra.mxu0 %v2004
        %v2205 = vpop.f32.mrf.mxu0
        %v2206 = vadd.f32 %v2009, %v2205
        %v2207 = vpop.f32.mrf.mxu0
        %v2208 = vpop.f32.mrf.mxu0
        %v2209 = vpop.f32.mrf.mxu0
        %2210 = vdwg.mxu0
        %2211 = vmatprep.subr.bf16.mxu0 0
        %2212 = vmatpush1.bf16.xpose.msra.mxu0 0
        %2213 = vmatprep.subr.bf16.mxu0 0
        %2214 = vmatpush1.bf16.xpose.msra.mxu0 0
        %2215 = vmatprep.subr.bf16.mxu0 0
        %2216 = vmatpush1.bf16.xpose.msra.mxu0 0
        %2217 = vmatprep.subr.bf16.mxu0 0
        %2218 = vmatpush1.bf16.xpose.msra.mxu0 0
        %2219 = vmatprep.subr.bf16.mxu0 0
        %2220 = vmatpush1.bf16.xpose.msra.mxu0 0
        %2221 = vmatprep.subr.bf16.mxu0 0
        %2222 = vmatpush1.bf16.xpose.msra.mxu0 0
        %2223 = vmatprep.subr.bf16.mxu0 0
        %2224 = vmatpush1.bf16.xpose.msra.mxu0 0
        %2225 = vmatprep.subr.bf16.mxu0 0
        %2226 = vmatpush1.bf16.xpose.msra.mxu0 %v2001
        %2227 = vmatprep.subr.bf16.mxu0 0
        %2228 = vmatpush2.bf16.xpose.msra.mxu0 0
        %2229 = vmatprep.subr.bf16.mxu0 0
        %2230 = vmatpush2.bf16.xpose.msra.mxu0 0
        %2231 = vmatprep.subr.bf16.mxu0 0
        %2232 = vmatpush2.bf16.xpose.msra.mxu0 0
        %2233 = vmatprep.subr.bf16.mxu0 0
        %2234 = vmatpush2.bf16.xpose.msra.mxu0 0
        %2235 = vmatprep.subr.bf16.mxu0 0
        %2236 = vmatpush2.bf16.xpose.msra.mxu0 0
        %2237 = vmatprep.subr.bf16.mxu0 0
        %2238 = vmatpush2.bf16.xpose.msra.mxu0 0
        %2239 = vmatprep.subr.bf16.mxu0 0
        %2240 = vmatpush2.bf16.xpose.msra.mxu0 0
        %2241 = vmatprep.subr.bf16.mxu0 0
        %2242 = vmatpush2.bf16.xpose.msra.mxu0 0
        %2243 = vmatprep.mubr.bf16.mxu0 0
        %2244 = vmatmul.mubr.bf16.gmra.mxu0 %v2004
        %v2245 = vpop.f32.mrf.mxu0
        %v2246 = vadd.f32 %v2009, %v2245
        %v2247 = vpop.f32.mrf.mxu0
        %v2248 = vpop.f32.mrf.mxu0
        %v2249 = vpop.f32.mrf.mxu0
        %2250 = vdwg.mxu0
        %2251 = vmatprep.subr.bf16.mxu0 0
        %2252 = vmatpush1.bf16.xpose.msra.mxu0 0
        %2253 = vmatprep.subr.bf16.mxu0 0
        %2254 = vmatpush1.bf16.xpose.msra.mxu0 0
        %2255 = vmatprep.subr.bf16.mxu0 0
        %2256 = vmatpush1.bf16.xpose.msra.mxu0 0
        %2257 = vmatprep.subr.bf16.mxu0 0
        %2258 = vmatpush1.bf16.xpose.msra.mxu0 0
        %2259 = vmatprep.subr.bf16.mxu0 0
        %2260 = vmatpush1.bf16.xpose.msra.mxu0 0
        %2261 = vmatprep.subr.bf16.mxu0 0
        %2262 = vmatpush1.bf16.xpose.msra.mxu0 0
        %2263 = vmatprep.subr.bf16.mxu0 0
        %2264 = vmatpush1.bf16.xpose.msra.mxu0 0
        %2265 = vmatprep.subr.bf16.mxu0 0
        %2266 = vmatpush1.bf16.xpose.msra.mxu0 %v2002
        %2267 = vmatprep.subr.bf16.mxu0 0
        %2268 = vmatpush2.bf16.xpose.msra.mxu0 0
        %2269 = vmatprep.subr.bf16.mxu0 0
        %2270 = vmatpush2.bf16.xpose.msra.mxu0 0
        %2271 = vmatprep.subr.bf16.mxu0 0
        %2272 = vmatpush2.bf16.xpose.msra.mxu0 0
        %2273 = vmatprep.subr.bf16.mxu0 0
        %2274 = vmatpush2.bf16.xpose.msra.mxu0 0
        %2275 = vmatprep.subr.bf16.mxu0 0
        %2276 = vmatpush2.bf16.xpose.msra.mxu0 0
        %2277 = vmatprep.subr.bf16.mxu0 0
        %2278 = vmatpush2.bf16.xpose.msra.mxu0 0
        %2279 = vmatprep.subr.bf16.mxu0 0
        %2280 = vmatpush2.bf16.xpose.msra.mxu0 0
        %2281 = vmatprep.subr.bf16.mxu0 0
        %2282 = vmatpush2.bf16.xpose.msra.mxu0 0
        %2283 = vmatprep.mubr.bf16.mxu0 0
        %2284 = vmatmul.mubr.bf16.gmra.mxu0 %v2004
        %v2285 = vpop.f32.mrf.mxu0
        %v2286 = vadd.f32 %v2009, %v2285
        %v2287 = vpop.f32.mrf.mxu0
        %v2288 = vpop.f32.mrf.mxu0
        %v2289 = vpop.f32.mrf.mxu0
        %2290 = vdwg.mxu0
        %2291 = vmatprep.subr.bf16.mxu0 0
        %2292 = vmatpush1.bf16.xpose.msra.mxu0 0
        %2293 = vmatprep.subr.bf16.mxu0 0
        %2294 = vmatpush1.bf16.xpose.msra.mxu0 0
        %2295 = vmatprep.subr.bf16.mxu0 0
        %2296 = vmatpush1.bf16.xpose.msra.mxu0 0
        %2297 = vmatprep.subr.bf16.mxu0 0
        %2298 = vmatpush1.bf16.xpose.msra.mxu0 0
        %2299 = vmatprep.subr.bf16.mxu0 0
        %2300 = vmatpush1.bf16.xpose.msra.mxu0 0
        %2301 = vmatprep.subr.bf16.mxu0 0
        %2302 = vmatpush1.bf16.xpose.msra.mxu0 0
        %2303 = vmatprep.subr.bf16.mxu0 0
        %2304 = vmatpush1.bf16.xpose.msra.mxu0 0
        %2305 = vmatprep.subr.bf16.mxu0 0
        %2306 = vmatpush1.bf16.xpose.msra.mxu0 %v2003
        %2307 = vmatprep.subr.bf16.mxu0 0
        %2308 = vmatpush2.bf16.xpose.msra.mxu0 0
        %2309 = vmatprep.subr.bf16.mxu0 0
        %2310 = vmatpush2.bf16.xpose.msra.mxu0 0
        %2311 = vmatprep.subr.bf16.mxu0 0
        %2312 = vmatpush2.bf16.xpose.msra.mxu0 0
        %2313 = vmatprep.subr.bf16.mxu0 0
        %2314 = vmatpush2.bf16.xpose.msra.mxu0 0
        %2315 = vmatprep.subr.bf16.mxu0 0
        %2316 = vmatpush2.bf16.xpose.msra.mxu0 0
        %2317 = vmatprep.subr.bf16.mxu0 0
        %2318 = vmatpush2.bf16.xpose.msra.mxu0 0
        %2319 = vmatprep.subr.bf16.mxu0 0
        %2320 = vmatpush2.bf16.xpose.msra.mxu0 0
        %2321 = vmatprep.subr.bf16.mxu0 0
        %2322 = vmatpush2.bf16.xpose.msra.mxu0 0
        %2323 = vmatprep.mubr.bf16.mxu0 0
        %2324 = vmatmul.mubr.bf16.gmra.mxu0 %v2004
        %v2325 = vpop.f32.mrf.mxu0
        %v2326 = vadd.f32 %v2009, %v2325
        %v2327 = vpop.f32.mrf.mxu0
        %v2328 = vpop.f32.mrf.mxu0
        %v2329 = vpop.f32.mrf.mxu0
        %2330 = vdwg.mxu0
        %v2331 = vld [vmem:[#allocation10] sm:$0xf]
        %v2332 = vld [vmem:[#allocation10 + $0x4] sm:$0xf]
        %v2333 = vld [vmem:[#allocation10 + $0x8] sm:$0xf]
        %v2334 = vld [vmem:[#allocation10 + $0xc] sm:$0xf]
        %v2335 = vld [vmem:[#allocation10 + $0x10] sm:$0xf]
        %v2336 = vld [vmem:[#allocation10 + $0x14] sm:$0xf]
        %v2337 = vld [vmem:[#allocation10 + $0x18] sm:$0xf]
        %v2338 = vld [vmem:[#allocation10 + $0x1c] sm:$0xf]
        %v2339 = vld [vmem:[#allocation10 + $0x20] sm:$0xf]
        %v2340 = vld [vmem:[#allocation10 + $0x24] sm:$0xf]
        %v2341 = vld [vmem:[#allocation10 + $0x28] sm:$0xf]
        %v2342 = vld [vmem:[#allocation10 + $0x2c] sm:$0xf]
        %v2343 = vld [vmem:[#allocation10 + $0x30] sm:$0xf]
        %v2344 = vld [vmem:[#allocation10 + $0x34] sm:$0xf]
        %v2345 = vld [vmem:[#allocation10 + $0x38] sm:$0xf]
        %v2346 = vld [vmem:[#allocation10 + $0x3c] sm:$0xf]
        %v2347 = vpack.c.bf16 %v2086, %v2046
        %v2348 = vpack.c.bf16 %v2166, %v2126
        %v2349 = vpack.c.bf16 %v2246, %v2206
        %v2350 = vpack.c.bf16 %v2326, %v2286
        %v2367 = vunpack.c.l.b16 %v2331
        %v2368 = vunpack.c.l.b16 %v2332
        %v2369 = vunpack.c.l.b16 %v2333
        %v2370 = vunpack.c.l.b16 %v2334
        %v2371 = vunpack.c.l.b16 %v2335
        %v2372 = vunpack.c.l.b16 %v2336
        %v2373 = vunpack.c.l.b16 %v2337
        %v2374 = vunpack.c.l.b16 %v2338
        %v2375 = vunpack.c.l.b16 %v2339
        %v2376 = vunpack.c.l.b16 %v2340
        %v2377 = vunpack.c.l.b16 %v2341
        %v2378 = vunpack.c.l.b16 %v2342
        %v2379 = vunpack.c.l.b16 %v2343
        %v2380 = vunpack.c.l.b16 %v2344
        %v2381 = vunpack.c.l.b16 %v2345
        %v2382 = vunpack.c.l.b16 %v2346
        %v2383 = vpack.c.b16 %v2368, %v2367
        %v2384 = vpack.c.b16 %v2370, %v2369
        %v2385 = vpack.c.b16 %v2372, %v2371
        %v2386 = vpack.c.b16 %v2374, %v2373
        %v2387 = vpack.c.b16 %v2376, %v2375
        %v2388 = vpack.c.b16 %v2378, %v2377
        %v2389 = vpack.c.b16 %v2380, %v2379
        %v2390 = vpack.c.b16 %v2382, %v2381
        %v2392 = vsel %vm739, %v2383, 0
        %v2395 = vsel %vm739, %v2384, 0
        %v2398 = vsel %vm739, %v2385, 0
        %v2401 = vsel %vm739, %v2386, 0
        %v2404 = vsel %vm739, %v2387, 0
        %v2407 = vsel %vm739, %v2388, 0
        %v2410 = vsel %vm739, %v2389, 0
        %v2413 = vsel %vm739, %v2390, 0
        %2415 = vmatprep.subr.bf16.mxu0 0
        %2416 = vmatpush1.bf16.msra.mxu0 0
        %2417 = vmatprep.subr.bf16.mxu0 0
        %2418 = vmatpush1.bf16.msra.mxu0 0
        %2419 = vmatprep.subr.bf16.mxu0 0
        %2420 = vmatpush1.bf16.msra.mxu0 0
        %2421 = vmatprep.subr.bf16.mxu0 0
        %2422 = vmatpush1.bf16.msra.mxu0 0
        %2423 = vmatprep.subr.bf16.mxu0 0
        %2424 = vmatpush1.bf16.msra.mxu0 %v2350
        %2425 = vmatprep.subr.bf16.mxu0 0
        %2426 = vmatpush1.bf16.msra.mxu0 %v2349
        %2427 = vmatprep.subr.bf16.mxu0 0
        %2428 = vmatpush1.bf16.msra.mxu0 %v2348
        %2429 = vmatprep.subr.bf16.mxu0 0
        %2430 = vmatpush1.bf16.msra.mxu0 %v2347
        %2431 = vmatprep.subr.bf16.mxu0 0
        %2432 = vmatpush2.bf16.msra.mxu0 0
        %2433 = vmatprep.subr.bf16.mxu0 0
        %2434 = vmatpush2.bf16.msra.mxu0 0
        %2435 = vmatprep.subr.bf16.mxu0 0
        %2436 = vmatpush2.bf16.msra.mxu0 0
        %2437 = vmatprep.subr.bf16.mxu0 0
        %2438 = vmatpush2.bf16.msra.mxu0 0
        %2439 = vmatprep.subr.bf16.mxu0 0
        %2440 = vmatpush2.bf16.msra.mxu0 0
        %2441 = vmatprep.subr.bf16.mxu0 0
        %2442 = vmatpush2.bf16.msra.mxu0 0
        %2443 = vmatprep.subr.bf16.mxu0 0
        %2444 = vmatpush2.bf16.msra.mxu0 0
        %2445 = vmatprep.subr.bf16.mxu0 0
        %2446 = vmatpush2.bf16.msra.mxu0 0
        %2447 = vmatprep.mubr.bf16.mxu0 0
        %2448 = vmatmul.mubr.bf16.gmra.mxu0 %v2392
        %v2449 = vpop.f32.mrf.mxu0
        %v2450 = vadd.f32 0.0, %v2449
        %v2451 = vpop.f32.mrf.mxu0
        %v2452 = vpop.f32.mrf.mxu0
        %v2453 = vadd.f32 0.0, %v2452
        %v2454 = vpop.f32.mrf.mxu0
        %2455 = vmatprep.mubr.bf16.mxu0 0
        %2456 = vmatmul.mubr.bf16.gmra.mxu0 %v2395
        %v2457 = vpop.f32.mrf.mxu0
        %v2458 = vadd.f32 0.0, %v2457
        %v2459 = vpop.f32.mrf.mxu0
        %v2460 = vpop.f32.mrf.mxu0
        %v2461 = vadd.f32 0.0, %v2460
        %v2462 = vpop.f32.mrf.mxu0
        %2463 = vmatprep.mubr.bf16.mxu0 0
        %2464 = vmatmul.mubr.bf16.gmra.mxu0 %v2398
        %v2465 = vpop.f32.mrf.mxu0
        %v2466 = vadd.f32 0.0, %v2465
        %v2467 = vpop.f32.mrf.mxu0
        %v2468 = vpop.f32.mrf.mxu0
        %v2469 = vadd.f32 0.0, %v2468
        %v2470 = vpop.f32.mrf.mxu0
        %2471 = vmatprep.mubr.bf16.mxu0 0
        %2472 = vmatmul.mubr.bf16.gmra.mxu0 %v2401
        %v2473 = vpop.f32.mrf.mxu0
        %v2474 = vadd.f32 0.0, %v2473
        %v2475 = vpop.f32.mrf.mxu0
        %v2476 = vpop.f32.mrf.mxu0
        %v2477 = vadd.f32 0.0, %v2476
        %v2478 = vpop.f32.mrf.mxu0
        %2479 = vmatprep.mubr.bf16.mxu0 0
        %2480 = vmatmul.mubr.bf16.gmra.mxu0 %v2404
        %v2481 = vpop.f32.mrf.mxu0
        %v2482 = vadd.f32 0.0, %v2481
        %v2483 = vpop.f32.mrf.mxu0
        %v2484 = vpop.f32.mrf.mxu0
        %v2485 = vadd.f32 0.0, %v2484
        %v2486 = vpop.f32.mrf.mxu0
        %2487 = vmatprep.mubr.bf16.mxu0 0
        %2488 = vmatmul.mubr.bf16.gmra.mxu0 %v2407
        %v2489 = vpop.f32.mrf.mxu0
        %v2490 = vadd.f32 0.0, %v2489
        %v2491 = vpop.f32.mrf.mxu0
        %v2492 = vpop.f32.mrf.mxu0
        %v2493 = vadd.f32 0.0, %v2492
        %v2494 = vpop.f32.mrf.mxu0
        %2495 = vmatprep.mubr.bf16.mxu0 0
        %2496 = vmatmul.mubr.bf16.gmra.mxu0 %v2410
        %v2497 = vpop.f32.mrf.mxu0
        %v2498 = vadd.f32 0.0, %v2497
        %v2499 = vpop.f32.mrf.mxu0
        %v2500 = vpop.f32.mrf.mxu0
        %v2501 = vadd.f32 0.0, %v2500
        %v2502 = vpop.f32.mrf.mxu0
        %2503 = vmatprep.mubr.bf16.mxu0 0
        %2504 = vmatmul.mubr.bf16.gmra.mxu0 %v2413
        %v2505 = vpop.f32.mrf.mxu0
        %v2506 = vadd.f32 0.0, %v2505
        %v2507 = vpop.f32.mrf.mxu0
        %v2508 = vpop.f32.mrf.mxu0
        %v2509 = vadd.f32 0.0, %v2508
        %v2510 = vpop.f32.mrf.mxu0
        %2511 = vdwg.mxu0
        %v2512 = vpack.c.bf16 %v2453, %v2450
        %v2513 = vpack.c.bf16 %v2461, %v2458
        %v2514 = vpack.c.bf16 %v2469, %v2466
        %v2515 = vpack.c.bf16 %v2477, %v2474
        %v2516 = vpack.c.bf16 %v2485, %v2482
        %v2517 = vpack.c.bf16 %v2493, %v2490
        %v2518 = vpack.c.bf16 %v2501, %v2498
        %v2519 = vpack.c.bf16 %v2509, %v2506
        %v2520 = vld [vmem:[%s14] sm:$0xf]
        %vm2521 = vcmask 64512
        %v2523 = vsel %vm2521, %v2512, 0
        %v2526 = vsel %vm2521, %v2513, 0
        %v2529 = vsel %vm2521, %v2514, 0
        %v2532 = vsel %vm2521, %v2515, 0
        %v2535 = vsel %vm2521, %v2516, 0
        %v2538 = vsel %vm2521, %v2517, 0
        %v2541 = vsel %vm2521, %v2518, 0
        %v2544 = vsel %vm2521, %v2519, 0
        %v2547 = vsel %vm1775, %v2520, 0
        %2549 = vmatprep.subr.bf16.mxu0 0
        %2550 = vmatpush1.bf16.msra.mxu0 0
        %2551 = vmatprep.subr.bf16.mxu0 0
        %2552 = vmatpush1.bf16.msra.mxu0 0
        %2553 = vmatprep.subr.bf16.mxu0 0
        %2554 = vmatpush1.bf16.msra.mxu0 0
        %2555 = vmatprep.subr.bf16.mxu0 0
        %2556 = vmatpush1.bf16.msra.mxu0 0
        %2557 = vmatprep.subr.bf16.mxu0 0
        %2558 = vmatpush1.bf16.msra.mxu0 0
        %2559 = vmatprep.subr.bf16.mxu0 0
        %2560 = vmatpush1.bf16.msra.mxu0 0
        %2561 = vmatprep.subr.bf16.mxu0 0
        %2562 = vmatpush1.bf16.msra.mxu0 0
        %2563 = vmatprep.subr.bf16.mxu0 0
        %2564 = vmatpush1.bf16.msra.mxu0 %v2547
        %2565 = vmatprep.subr.bf16.mxu0 0
        %2566 = vmatpush2.bf16.msra.mxu0 0
        %2567 = vmatprep.subr.bf16.mxu0 0
        %2568 = vmatpush2.bf16.msra.mxu0 0
        %2569 = vmatprep.subr.bf16.mxu0 0
        %2570 = vmatpush2.bf16.msra.mxu0 0
        %2571 = vmatprep.subr.bf16.mxu0 0
        %2572 = vmatpush2.bf16.msra.mxu0 0
        %2573 = vmatprep.subr.bf16.mxu0 0
        %2574 = vmatpush2.bf16.msra.mxu0 0
        %2575 = vmatprep.subr.bf16.mxu0 0
        %2576 = vmatpush2.bf16.msra.mxu0 0
        %2577 = vmatprep.subr.bf16.mxu0 0
        %2578 = vmatpush2.bf16.msra.mxu0 0
        %2579 = vmatprep.subr.bf16.mxu0 0
        %2580 = vmatpush2.bf16.msra.mxu0 0
        %2581 = vmatprep.mubr.bf16.mxu0 0
        %2582 = vmatmul.mubr.bf16.gmra.mxu0 %v2523
        %v2583 = vpop.f32.mrf.mxu0
        %v2584 = vadd.f32 0.0, %v2583
        %v2585 = vpop.f32.mrf.mxu0
        %v2586 = vpop.f32.mrf.mxu0
        %v2587 = vadd.f32 0.0, %v2586
        %v2588 = vpop.f32.mrf.mxu0
        %2589 = vmatprep.mubr.bf16.mxu0 0
        %2590 = vmatmul.mubr.bf16.gmra.mxu0 %v2526
        %v2591 = vpop.f32.mrf.mxu0
        %v2592 = vadd.f32 0.0, %v2591
        %v2593 = vpop.f32.mrf.mxu0
        %v2594 = vpop.f32.mrf.mxu0
        %v2595 = vadd.f32 0.0, %v2594
        %v2596 = vpop.f32.mrf.mxu0
        %2597 = vmatprep.mubr.bf16.mxu0 0
        %2598 = vmatmul.mubr.bf16.gmra.mxu0 %v2529
        %v2599 = vpop.f32.mrf.mxu0
        %v2600 = vadd.f32 0.0, %v2599
        %v2601 = vpop.f32.mrf.mxu0
        %v2602 = vpop.f32.mrf.mxu0
        %v2603 = vadd.f32 0.0, %v2602
        %v2604 = vpop.f32.mrf.mxu0
        %2605 = vmatprep.mubr.bf16.mxu0 0
        %2606 = vmatmul.mubr.bf16.gmra.mxu0 %v2532
        %v2607 = vpop.f32.mrf.mxu0
        %v2608 = vadd.f32 0.0, %v2607
        %v2609 = vpop.f32.mrf.mxu0
        %v2610 = vpop.f32.mrf.mxu0
        %v2611 = vadd.f32 0.0, %v2610
        %v2612 = vpop.f32.mrf.mxu0
        %2613 = vmatprep.mubr.bf16.mxu0 0
        %2614 = vmatmul.mubr.bf16.gmra.mxu0 %v2535
        %v2615 = vpop.f32.mrf.mxu0
        %v2616 = vadd.f32 0.0, %v2615
        %v2617 = vpop.f32.mrf.mxu0
        %v2618 = vpop.f32.mrf.mxu0
        %v2619 = vadd.f32 0.0, %v2618
        %v2620 = vpop.f32.mrf.mxu0
        %2621 = vmatprep.mubr.bf16.mxu0 0
        %2622 = vmatmul.mubr.bf16.gmra.mxu0 %v2538
        %v2623 = vpop.f32.mrf.mxu0
        %v2624 = vadd.f32 0.0, %v2623
        %v2625 = vpop.f32.mrf.mxu0
        %v2626 = vpop.f32.mrf.mxu0
        %v2627 = vadd.f32 0.0, %v2626
        %v2628 = vpop.f32.mrf.mxu0
        %2629 = vmatprep.mubr.bf16.mxu0 0
        %2630 = vmatmul.mubr.bf16.gmra.mxu0 %v2541
        %v2631 = vpop.f32.mrf.mxu0
        %v2632 = vadd.f32 0.0, %v2631
        %v2633 = vpop.f32.mrf.mxu0
        %v2634 = vpop.f32.mrf.mxu0
        %v2635 = vadd.f32 0.0, %v2634
        %v2636 = vpop.f32.mrf.mxu0
        %2637 = vmatprep.mubr.bf16.mxu0 0
        %2638 = vmatmul.mubr.bf16.gmra.mxu0 %v2544
        %v2639 = vpop.f32.mrf.mxu0
        %v2640 = vadd.f32 0.0, %v2639
        %v2641 = vpop.f32.mrf.mxu0
        %v2642 = vpop.f32.mrf.mxu0
        %v2643 = vadd.f32 0.0, %v2642
        %v2644 = vpop.f32.mrf.mxu0
        %2645 = vdwg.mxu0
        %vm2646 = vcmask 130048
        %2647 = vst.msk [vmem:[%s580] sm:$0xff] %vm2646, %v2584
        %2648 = vst.msk [vmem:[%s580 + $0x8] sm:$0xff] %vm2646, %v2587
        %2649 = vst.msk [vmem:[%s580 + $0x10] sm:$0xff] %vm2646, %v2592
        %2650 = vst.msk [vmem:[%s580 + $0x18] sm:$0xff] %vm2646, %v2595
        %2651 = vst.msk [vmem:[%s580 + $0x20] sm:$0xff] %vm2646, %v2600
        %2652 = vst.msk [vmem:[%s580 + $0x28] sm:$0xff] %vm2646, %v2603
        %2653 = vst.msk [vmem:[%s580 + $0x30] sm:$0xff] %vm2646, %v2608
        %2654 = vst.msk [vmem:[%s580 + $0x38] sm:$0xff] %vm2646, %v2611
        %2655 = vst.msk [vmem:[%s580 + $0x40] sm:$0xff] %vm2646, %v2616
        %2656 = vst.msk [vmem:[%s580 + $0x48] sm:$0xff] %vm2646, %v2619
        %2657 = vst.msk [vmem:[%s580 + $0x50] sm:$0xff] %vm2646, %v2624
        %2658 = vst.msk [vmem:[%s580 + $0x58] sm:$0xff] %vm2646, %v2627
        %2659 = vst.msk [vmem:[%s580 + $0x60] sm:$0xff] %vm2646, %v2632
        %2660 = vst.msk [vmem:[%s580 + $0x68] sm:$0xff] %vm2646, %v2635
        %2661 = vst.msk [vmem:[%s580 + $0x70] sm:$0xff] %vm2646, %v2640
        %2662 = vst.msk [vmem:[%s580 + $0x78] sm:$0xff] %vm2646, %v2643
        %p2663 = scmp.lt.s32.totalorder %s30, 1
        %s2664 = scalar_select %p2663, %s30, 1
        %s2665 = smul.addr %s2664, 16
        %s2666 = smul.addr %s2665, 8
        %s2667 = scalar_lea.vmem %s15, %s2666
        // Predicated region
        $region105: #{pspnet_forward.1} parent=79 // pred_check
          %p2668 = pneg %p368
        $region106: #{pspnet_forward.1} parent=79 // pred_check_branch
          %2670 = sbr.rel (%p2668) target = $region108
        $region107: #{pspnet_forward.1} parent=79 // pred_region
          _
        $region108: #{pspnet_forward.1} parent=79 // pred_fallthru
          _
      $region80: #{pspnet_forward.1} parent=5 // pred_fallthru
        _
      %p2671 = scmp.le.s32.totalorder 2, %s25
      // Predicated region
      $region109: #{pspnet_forward.1} parent=5 // pred_check
        %p2672 = pneg %p2671
      $region110: #{pspnet_forward.1} parent=5 // pred_check_branch
        %2674 = sbr.rel (%p2672) target = $region112
      $region111: #{pspnet_forward.1} parent=5 // pred_region
        %s2675 = ssub.s32 %s25, 2
        // Predicated region
        $region113: #{pspnet_forward.1} parent=111 // pred_check
          %p2676 = pneg %p374
        $region114: #{pspnet_forward.1} parent=111 // pred_check_branch
          %2678 = sbr.rel (%p2676) target = $region116
        $region115: #{pspnet_forward.1} parent=111 // pred_region
          %p2679 = scmp.lt.s32.totalorder %s31, 1
          %s2680 = scalar_select %p2679, %s31, 1
          %s2681 = smul.addr %s2680, 16
          %s2682 = smul.addr %s2681, 8
          %s2683 = scalar_lea.vmem %s15, %s2682
        $region116: #{pspnet_forward.1} parent=111 // pred_fallthru
          _
      $region112: #{pspnet_forward.1} parent=5 // pred_fallthru
        _
    $region6: #{pspnet_forward.1} parent=1 // loop_footer
      %s29 = sadd.s32 1, %s25
    $region7: #{pspnet_forward.1} parent=1 // loop_footer_branch
      %24 = sbr.rel target = $region3
    $region8: #{pspnet_forward.1} parent=1 // loop_exit
      _
    %2684 = vsyncpa [#allocation3], 1
    %s2685 = scalar_lea.sflag [#allocation3], 1
    %2686 = vsyncpa %s2685, 1
    %2687 = vsyncpa [#allocation5], 1
    %2688 = vsyncpa [#allocation8], 1
    %2689 = vsyncpa [#allocation11], 1

</llo_original>
